<compile_context>
chip_gen: v7x
topology: tpu7x:2x2x1
jax: 0.10.0
libtpu: 0.0.40
codegen_flags: <defaults>
</compile_context>

<pallas_src>
import jax
import jax.numpy as jnp
from jax import lax
from jax.experimental import pallas as pl
from jax.experimental.pallas import tpu as pltpu

# ---------------- problem geometry ----------------
C_IN, C_OUT = 3, 32
KH = KW = 5
H_IN = W_IN = 224
H_CONV = H_IN - KH + 1            # 220 conv rows
H_P = W_P = 110                   # pooled output
W_HALF = 113                      # parity-split input width (112 real cols + 1 zero dummy)
K_FEAT = C_OUT * H_P * W_P        # 387200 Linear features

R_STRIP = 4                       # conv rows produced per strip (=> 2 pooled rows)
SLAB_H = R_STRIP + KH - 1         # 8 input rows per slab (exactly one sublane group)
N_SLABS = 6                       # per input channel: E@0, E@1, E@2, O@0, O@1, O@2
SLAB_W = 111                      # lanes per slab (covers conv cols needed by both parities)
K_DIM = C_IN * N_SLABS * SLAB_H   # 144 = matmul contraction length
M_DIM = R_STRIP * C_OUT           # 128 = matmul rows: (conv row within strip, out channel)
N_STRIPS = H_CONV // R_STRIP      # 55 strips, no tail

# kw -> slab index maps (slab order per channel: E@0,E@1,E@2,O@0,O@1,O@2)
KW_TO_SLAB_EVEN = {0: 0, 1: 4, 2: 1, 3: 5, 4: 2}   # conv col 2j
KW_TO_SLAB_ODD = {0: 3, 1: 0, 2: 4, 3: 1, 4: 5}    # conv col 2t-1 ("wide odd", t=0 is padding)


# ---------------------------------------------------------------------------
# Host-side (one-time) parameter preparation.
# ---------------------------------------------------------------------------
def _build_wtilde(wc, kw_to_slab):
    """Banded block-Toeplitz matmul weight (M_DIM, K_DIM) for one output-column parity.

    Row (r*32 + o), column (ci*48 + s*8 + rr) holds W[o, ci, rr - r, kw(s)] when 0 <= rr-r < 5,
    else 0, so that  W_tilde @ S  computes conv rows r0..r0+3 for all 32 channels at once.
    """
    v = jnp.zeros((C_OUT, C_IN, N_SLABS, KH), jnp.float32)      # [o, ci, slab, kh]
    for kw, s in kw_to_slab.items():
        v = v.at[:, :, s, :].set(wc[:, :, :, kw])
    a = jnp.zeros((R_STRIP, C_OUT, C_IN, N_SLABS, SLAB_H), jnp.float32)
    for r in range(R_STRIP):
        a = a.at[r, :, :, :, r:r + KH].set(v)                   # rr = r + kh  (fits 0..7 exactly)
    return a.reshape(M_DIM, K_DIM).astype(jnp.bfloat16)


def prepare_params(wc, bc, wl, bl):
    """One-time prep of PyTorch-layout parameters for the fused kernel."""
    we = _build_wtilde(wc, KW_TO_SLAB_EVEN)                     # (128, 144) bf16
    wo = _build_wtilde(wc, KW_TO_SLAB_ODD)                      # (128, 144) bf16
    bc_col = jnp.tile(bc.reshape(1, C_OUT), (R_STRIP, 1)).reshape(M_DIM, 1)   # (128, 1) f32
    # Linear weight: PyTorch feature order is (c, h, w); kernel consumes it as [h, c, w].
    wl_r = wl.reshape(2, C_OUT, H_P, W_P)
    wl0 = jnp.transpose(wl_r[0], (1, 0, 2))                     # (110, 32, 110) f32
    wl1 = jnp.transpose(wl_r[1], (1, 0, 2))                     # (110, 32, 110) f32
    bl_row = bl.reshape(1, 2)
    return we, wo, bc_col, wl0, wl1, bl_row


# ---------------------------------------------------------------------------
# Fused kernel: conv (MXU) + bias + ReLU + maxpool + Linear, one grid step per image.
# ---------------------------------------------------------------------------
def cnn_fused_kernel(xe_ref, xo_ref, we_ref, wo_ref, bc_ref, wl0_ref, wl1_ref, bl_ref, o_ref):
    # xe_ref/xo_ref: (3, 224, 113) f32   even / odd input columns (each with one zero dummy col)
    # we_ref/wo_ref: (128, 144) bf16     block-Toeplitz conv weights (even / odd conv columns)
    # bc_ref:        (128, 1)  f32       conv bias tiled over the 4 strip rows
    # wl0_ref/wl1_ref: (110, 32, 110) f32  Linear weight planes, layout [pooled_h, c, pooled_w]
    # bl_ref:        (1, 2) f32          Linear bias
    # o_ref:         (1, 2) f32          logits for this image
    lane0 = lax.broadcasted_iota(jnp.int32, (1, SLAB_W), 1) == 0
    neg_inf = jnp.float32(-jnp.inf)

    def strip(k, carry):
        prev_wp, acc0, acc1 = carry
        r0 = pl.multiple_of(k * R_STRIP, R_STRIP)               # first conv row of the strip

        # --- im2row: stack 18 lane-shifted 8-row slabs (sublane-aligned concat, lanes = width)
        pieces = []
        for ci in range(C_IN):
            e_slab = xe_ref[ci, pl.ds(r0, SLAB_H), :]           # (8, 113) f32
            o_slab = xo_ref[ci, pl.ds(r0, SLAB_H), :]           # (8, 113) f32
            for d in range(3):
                pieces.append(e_slab[:, d:d + SLAB_W])
            for d in range(3):
                pieces.append(o_slab[:, d:d + SLAB_W])
        s_mat = jnp.concatenate(pieces, axis=0).astype(jnp.bfloat16)     # (144, 111)

        # --- conv on the MXU: all 32 channels x 4 conv rows per parity (f32 accumulate)
        conv_e = jnp.dot(we_ref[...], s_mat, preferred_element_type=jnp.float32)  # (128, 111)
        conv_o = jnp.dot(wo_ref[...], s_mat, preferred_element_type=jnp.float32)  # (128, 111)

        # --- bias + ReLU + W-pool (lane axis, static slices)
        bias = bc_ref[...]
        re = jnp.maximum(conv_e + bias, 0.0)                    # even conv cols 2j   (lane 110 unused)
        ro = jnp.maximum(conv_o + bias, 0.0)                    # odd  conv cols 2t-1
        ro = jnp.where(lane0, neg_inf, ro)                      # conv col -1 is maxpool padding (-inf)
        wp = jnp.maximum(jnp.maximum(re[:, 0:W_P], ro[:, 0:W_P]), ro[:, 1:W_P + 1])  # (128, 110)

        # --- H-pool: plain elementwise max of 32-row (per-conv-row) blocks
        p0 = jnp.maximum(jnp.maximum(prev_wp, wp[0:32, :]), wp[32:64, :])     # pooled row 2k
        p1 = jnp.maximum(jnp.maximum(wp[32:64, :], wp[64:96, :]), wp[96:128, :])  # pooled row 2k+1

        # --- fused Linear: accumulate against the VMEM-resident permuted weight
        hp = pl.multiple_of(2 * k, 2)
        acc0 = acc0 + p0 * wl0_ref[hp] + p1 * wl0_ref[hp + 1]
        acc1 = acc1 + p0 * wl1_ref[hp] + p1 * wl1_ref[hp + 1]

        return wp[96:128, :], acc0, acc1                        # carry last W-pooled conv row

    carry0 = (jnp.full((C_OUT, W_P), -jnp.inf, jnp.float32),    # conv row -1 = maxpool padding
              jnp.zeros((C_OUT, W_P), jnp.float32),
              jnp.zeros((C_OUT, W_P), jnp.float32))
    _, acc0, acc1 = lax.fori_loop(0, N_STRIPS, strip, carry0)

    s0 = jnp.sum(jnp.sum(acc0, axis=1, keepdims=True), axis=0, keepdims=True)   # (1, 1)
    s1 = jnp.sum(jnp.sum(acc1, axis=1, keepdims=True), axis=0, keepdims=True)   # (1, 1)
    o_ref[...] = jnp.concatenate([s0, s1], axis=1) + bl_ref[...]


def cnn_forward_prepared(x, prep):
    """Forward pass with pre-prepared parameters (see prepare_params)."""
    we, wo, bc_col, wl0, wl1, bl_row = prep
    n = x.shape[0]
    # Parity-split the input columns so the stride-2 W-pool only needs static lane slices.
    xe = jnp.pad(x[:, :, :, 0::2], ((0, 0), (0, 0), (0, 0), (0, 1)))   # cols 0,2,..,222 + zero dummy
    xo = jnp.pad(x[:, :, :, 1::2], ((0, 0), (0, 0), (0, 0), (1, 0)))   # zero "col -1" + cols 1,3,..,223

    out = pl.pallas_call(
        cnn_fused_kernel,
        out_shape=jax.ShapeDtypeStruct((n, 1, 2), jnp.float32),
        grid_spec=pltpu.PrefetchScalarGridSpec(
            num_scalar_prefetch=0,
            grid=(n,),
            in_specs=[
                pl.BlockSpec((None, C_IN, H_IN, W_HALF), lambda b: (b, 0, 0, 0)),
                pl.BlockSpec((None, C_IN, H_IN, W_HALF), lambda b: (b, 0, 0, 0)),
                pl.BlockSpec((M_DIM, K_DIM), lambda b: (0, 0)),
                pl.BlockSpec((M_DIM, K_DIM), lambda b: (0, 0)),
                pl.BlockSpec((M_DIM, 1), lambda b: (0, 0)),
                pl.BlockSpec((H_P, C_OUT, W_P), lambda b: (0, 0, 0)),
                pl.BlockSpec((H_P, C_OUT, W_P), lambda b: (0, 0, 0)),
                pl.BlockSpec((1, 2), lambda b: (0, 0)),
            ],
            out_specs=pl.BlockSpec((None, 1, 2), lambda b: (b, 0, 0)),
        ),
        compiler_params=pltpu.CompilerParams(
            dimension_semantics=("parallel",),      # v7x: batch split across both TensorCores
        ),
    )(xe, xo, we, wo, bc_col, wl0, wl1, bl_row)
    return out.reshape(n, 2)


# ---------------------------------------------------------------------------
# Pure-JAX reference (f32) for validation.
# ---------------------------------------------------------------------------
def cnn_reference(x, wc_oihw, bc, wl, bl):
    conv = lax.conv_general_dilated(
        x, wc_oihw, window_strides=(1, 1), padding="VALID",
        dimension_numbers=("NCHW", "OIHW", "NCHW"),
        precision=lax.Precision.HIGHEST)
    conv = conv + bc.reshape(1, -1, 1, 1)
    r = jnp.maximum(conv, 0.0)
    pooled = lax.reduce_window(
        r, -jnp.inf, lax.max,
        window_dimensions=(1, 1, 3, 3), window_strides=(1, 1, 2, 2),
        padding=((0, 0), (0, 0), (1, 1), (1, 1)))
    flat = pooled.reshape(x.shape[0], -1)
    return jnp.dot(flat, wl.T, precision=lax.Precision.HIGHEST) + bl


if __name__ == "__main__":
    key = jax.random.PRNGKey(0)
    kx, kw1, kb1, kw2, kb2 = jax.random.split(key, 5)

    N = 2
    x = jax.random.normal(kx, (N, C_IN, H_IN, W_IN), jnp.float32)

    # Deterministic synthetic parameters (PyTorch layouts).
    wc = jax.random.normal(kw1, (C_OUT, C_IN, KH, KW), jnp.float32) * 0.05       # Conv2d.weight
    bc = jax.random.normal(kb1, (C_OUT,), jnp.float32) * 0.05                    # Conv2d.bias
    wl = jax.random.normal(kw2, (2, K_FEAT), jnp.float32) * (1.0 / K_FEAT ** 0.5)  # Linear.weight
    bl = jax.random.normal(kb2, (2,), jnp.float32) * 0.01                        # Linear.bias

    prep = prepare_params(wc, bc, wl, bl)          # one-time weight prep (host/XLA side)
    fwd = jax.jit(cnn_forward_prepared)
    out = jax.block_until_ready(fwd(x, prep))

    ref = cnn_reference(x, wc, bc, wl, bl)
    err = float(jnp.max(jnp.abs(out - ref)))
    # bf16 MXU operands (f32 accumulate) give ~3e-3 max-abs error on these logits; real bugs
    # would show up as O(0.1+) errors, so 2e-2 keeps margin while still being a strict check.
    if not (err < 2e-2):
        raise AssertionError(f"Pallas output mismatch vs reference, max abs err = {err}")

    print("KERNEL_OK")
</pallas_src>

<mosaic_0001>
module attributes {stable_mosaic.version = 11 : i64} {
  func.func @cnn_fused_kernel(%arg0: i32, %arg1: memref<1x3x224x113xf32, #tpu.memory_space<vmem>>, %arg2: memref<1x3x224x113xf32, #tpu.memory_space<vmem>>, %arg3: memref<128x144xbf16, #tpu.memory_space<vmem>>, %arg4: memref<128x144xbf16, #tpu.memory_space<vmem>>, %arg5: memref<128x1xf32, #tpu.memory_space<vmem>>, %arg6: memref<110x32x110xf32, #tpu.memory_space<vmem>>, %arg7: memref<110x32x110xf32, #tpu.memory_space<vmem>>, %arg8: memref<1x2xf32, #tpu.memory_space<vmem>>, %arg9: memref<1x1x2xf32, #tpu.memory_space<vmem>>) attributes {dimension_semantics = [#tpu.dimension_semantics<parallel>], iteration_bounds = array<i64: 2>, scalar_prefetch = 0 : i64, scratch_operands = 0 : i64, tpu.core_type = #tpu.core_type<tc>, window_params = [{transform_indices = @transform_0, window_bounds = array<i64: 1, 3, 224, 113>}, {transform_indices = @transform_1, window_bounds = array<i64: 1, 3, 224, 113>}, {pipeline_mode = #tpu.pipeline_mode<synchronous>, transform_indices = @transform_2, window_bounds = array<i64: 128, 144>}, {pipeline_mode = #tpu.pipeline_mode<synchronous>, transform_indices = @transform_3, window_bounds = array<i64: 128, 144>}, {pipeline_mode = #tpu.pipeline_mode<synchronous>, transform_indices = @transform_4, window_bounds = array<i64: 128, 1>}, {pipeline_mode = #tpu.pipeline_mode<synchronous>, transform_indices = @transform_5, window_bounds = array<i64: 110, 32, 110>}, {pipeline_mode = #tpu.pipeline_mode<synchronous>, transform_indices = @transform_6, window_bounds = array<i64: 110, 32, 110>}, {pipeline_mode = #tpu.pipeline_mode<synchronous>, transform_indices = @transform_7, window_bounds = array<i64: 1, 2>}, {transform_indices = @transform_8, window_bounds = array<i64: 1, 1, 2>}]} {
    %0 = tpu.iota {dimensions = array<i32: 1>} : vector<1x111xi32>
    %c0_i32 = arith.constant 0 : i32
    %1 = vector.broadcast %c0_i32 : i32 to vector<1x111xi32>
    %2 = arith.cmpi eq, %0, %1 : vector<1x111xi32>
    %cst = arith.constant 0xFF800000 : f32
    %3 = vector.broadcast %cst : f32 to vector<32x110xf32>
    %cst_0 = arith.constant 0.000000e+00 : f32
    %4 = vector.broadcast %cst_0 : f32 to vector<32x110xf32>
    %cst_1 = arith.constant 0.000000e+00 : f32
    %5 = vector.broadcast %cst_1 : f32 to vector<32x110xf32>
    %cst_2 = arith.constant 0xFF800000 : f32
    %c0_i32_3 = arith.constant 0 : i32
    %c55_i32 = arith.constant 55 : i32
    %6 = arith.addi %c0_i32_3, %c55_i32 : i32
    %c1_i32 = arith.constant 1 : i32
    %7:3 = scf.for %arg10 = %c0_i32_3 to %6 step %c1_i32 iter_args(%arg11 = %3, %arg12 = %4, %arg13 = %5) -> (vector<32x110xf32>, vector<32x110xf32>, vector<32x110xf32>)  : i32 {
      %c4_i32 = arith.constant 4 : i32
      %22 = arith.muli %arg10, %c4_i32 : i32
      %23 = tpu.assume_multiple %22, 4 : i32
      %c0_13 = arith.constant 0 : index
      %c0_14 = arith.constant 0 : index
      %24 = arith.index_cast %23 : i32 to index
      %c0_15 = arith.constant 0 : index
      %25 = vector.load %arg1[%c0_13, %c0_14, %24, %c0_15] : memref<1x3x224x113xf32, #tpu.memory_space<vmem>>, vector<1x1x8x113xf32>
      %26 = vector.shape_cast %25 : vector<1x1x8x113xf32> to vector<8x113xf32>
      %c0_16 = arith.constant 0 : index
      %c0_17 = arith.constant 0 : index
      %27 = arith.index_cast %23 : i32 to index
      %c0_18 = arith.constant 0 : index
      %28 = vector.load %arg2[%c0_16, %c0_17, %27, %c0_18] : memref<1x3x224x113xf32, #tpu.memory_space<vmem>>, vector<1x1x8x113xf32>
      %29 = vector.shape_cast %28 : vector<1x1x8x113xf32> to vector<8x113xf32>
      %30 = vector.extract_strided_slice %26 {offsets = [0, 0], sizes = [8, 111], strides = [1, 1]} : vector<8x113xf32> to vector<8x111xf32>
      %31 = vector.extract_strided_slice %26 {offsets = [0, 1], sizes = [8, 111], strides = [1, 1]} : vector<8x113xf32> to vector<8x111xf32>
      %32 = vector.extract_strided_slice %26 {offsets = [0, 2], sizes = [8, 111], strides = [1, 1]} : vector<8x113xf32> to vector<8x111xf32>
      %33 = vector.extract_strided_slice %29 {offsets = [0, 0], sizes = [8, 111], strides = [1, 1]} : vector<8x113xf32> to vector<8x111xf32>
      %34 = vector.extract_strided_slice %29 {offsets = [0, 1], sizes = [8, 111], strides = [1, 1]} : vector<8x113xf32> to vector<8x111xf32>
      %35 = vector.extract_strided_slice %29 {offsets = [0, 2], sizes = [8, 111], strides = [1, 1]} : vector<8x113xf32> to vector<8x111xf32>
      %c0_19 = arith.constant 0 : index
      %c1 = arith.constant 1 : index
      %36 = arith.index_cast %23 : i32 to index
      %c0_20 = arith.constant 0 : index
      %37 = vector.load %arg1[%c0_19, %c1, %36, %c0_20] : memref<1x3x224x113xf32, #tpu.memory_space<vmem>>, vector<1x1x8x113xf32>
      %38 = vector.shape_cast %37 : vector<1x1x8x113xf32> to vector<8x113xf32>
      %c0_21 = arith.constant 0 : index
      %c1_22 = arith.constant 1 : index
      %39 = arith.index_cast %23 : i32 to index
      %c0_23 = arith.constant 0 : index
      %40 = vector.load %arg2[%c0_21, %c1_22, %39, %c0_23] : memref<1x3x224x113xf32, #tpu.memory_space<vmem>>, vector<1x1x8x113xf32>
      %41 = vector.shape_cast %40 : vector<1x1x8x113xf32> to vector<8x113xf32>
      %42 = vector.extract_strided_slice %38 {offsets = [0, 0], sizes = [8, 111], strides = [1, 1]} : vector<8x113xf32> to vector<8x111xf32>
      %43 = vector.extract_strided_slice %38 {offsets = [0, 1], sizes = [8, 111], strides = [1, 1]} : vector<8x113xf32> to vector<8x111xf32>
      %44 = vector.extract_strided_slice %38 {offsets = [0, 2], sizes = [8, 111], strides = [1, 1]} : vector<8x113xf32> to vector<8x111xf32>
      %45 = vector.extract_strided_slice %41 {offsets = [0, 0], sizes = [8, 111], strides = [1, 1]} : vector<8x113xf32> to vector<8x111xf32>
      %46 = vector.extract_strided_slice %41 {offsets = [0, 1], sizes = [8, 111], strides = [1, 1]} : vector<8x113xf32> to vector<8x111xf32>
      %47 = vector.extract_strided_slice %41 {offsets = [0, 2], sizes = [8, 111], strides = [1, 1]} : vector<8x113xf32> to vector<8x111xf32>
      %c0_24 = arith.constant 0 : index
      %c2 = arith.constant 2 : index
      %48 = arith.index_cast %23 : i32 to index
      %c0_25 = arith.constant 0 : index
      %49 = vector.load %arg1[%c0_24, %c2, %48, %c0_25] : memref<1x3x224x113xf32, #tpu.memory_space<vmem>>, vector<1x1x8x113xf32>
      %50 = vector.shape_cast %49 : vector<1x1x8x113xf32> to vector<8x113xf32>
      %c0_26 = arith.constant 0 : index
      %c2_27 = arith.constant 2 : index
      %51 = arith.index_cast %23 : i32 to index
      %c0_28 = arith.constant 0 : index
      %52 = vector.load %arg2[%c0_26, %c2_27, %51, %c0_28] : memref<1x3x224x113xf32, #tpu.memory_space<vmem>>, vector<1x1x8x113xf32>
      %53 = vector.shape_cast %52 : vector<1x1x8x113xf32> to vector<8x113xf32>
      %54 = vector.extract_strided_slice %50 {offsets = [0, 0], sizes = [8, 111], strides = [1, 1]} : vector<8x113xf32> to vector<8x111xf32>
      %55 = vector.extract_strided_slice %50 {offsets = [0, 1], sizes = [8, 111], strides = [1, 1]} : vector<8x113xf32> to vector<8x111xf32>
      %56 = vector.extract_strided_slice %50 {offsets = [0, 2], sizes = [8, 111], strides = [1, 1]} : vector<8x113xf32> to vector<8x111xf32>
      %57 = vector.extract_strided_slice %53 {offsets = [0, 0], sizes = [8, 111], strides = [1, 1]} : vector<8x113xf32> to vector<8x111xf32>
      %58 = vector.extract_strided_slice %53 {offsets = [0, 1], sizes = [8, 111], strides = [1, 1]} : vector<8x113xf32> to vector<8x111xf32>
      %59 = vector.extract_strided_slice %53 {offsets = [0, 2], sizes = [8, 111], strides = [1, 1]} : vector<8x113xf32> to vector<8x111xf32>
      %60 = tpu.concatenate %30, %31, %32, %33, %34, %35, %42, %43, %44, %45, %46, %47, %54, %55, %56, %57 in 0 : vector<8x111xf32>, vector<8x111xf32>, vector<8x111xf32>, vector<8x111xf32>, vector<8x111xf32>, vector<8x111xf32>, vector<8x111xf32>, vector<8x111xf32>, vector<8x111xf32>, vector<8x111xf32>, vector<8x111xf32>, vector<8x111xf32>, vector<8x111xf32>, vector<8x111xf32>, vector<8x111xf32>, vector<8x111xf32> -> vector<128x111xf32>
      %61 = tpu.concatenate %58, %59 in 0 : vector<8x111xf32>, vector<8x111xf32> -> vector<16x111xf32>
      %62 = tpu.concatenate %60, %61 in 0 : vector<128x111xf32>, vector<16x111xf32> -> vector<144x111xf32>
      %63 = arith.truncf %62 : vector<144x111xf32> to vector<144x111xbf16>
      %c0_29 = arith.constant 0 : index
      %c0_30 = arith.constant 0 : index
      %64 = vector.load %arg3[%c0_29, %c0_30] : memref<128x144xbf16, #tpu.memory_space<vmem>>, vector<128x144xbf16>
      %cst_31 = arith.constant dense<0.000000e+00> : vector<128x111xf32>
      %65 = tpu.matmul %64, %63, %cst_31 {dimension_numbers = #tpu.dot_dimension_numbers<[1], [0], [0], [1], [0, 0, 1, 1], [], []>} : vector<128x144xbf16>, vector<144x111xbf16>, vector<128x111xf32> -> vector<128x111xf32>
      %c0_32 = arith.constant 0 : index
      %c0_33 = arith.constant 0 : index
      %66 = vector.load %arg4[%c0_32, %c0_33] : memref<128x144xbf16, #tpu.memory_space<vmem>>, vector<128x144xbf16>
      %cst_34 = arith.constant dense<0.000000e+00> : vector<128x111xf32>
      %67 = tpu.matmul %66, %63, %cst_34 {dimension_numbers = #tpu.dot_dimension_numbers<[1], [0], [0], [1], [0, 0, 1, 1], [], []>} : vector<128x144xbf16>, vector<144x111xbf16>, vector<128x111xf32> -> vector<128x111xf32>
      %c0_35 = arith.constant 0 : index
      %c0_36 = arith.constant 0 : index
      %68 = vector.load %arg5[%c0_35, %c0_36] : memref<128x1xf32, #tpu.memory_space<vmem>>, vector<128x1xf32>
      %69 = vector.broadcast %68 : vector<128x1xf32> to vector<128x111xf32>
      %70 = arith.addf %65, %69 : vector<128x111xf32>
      %cst_37 = arith.constant 0.000000e+00 : f32
      %71 = vector.broadcast %cst_37 : f32 to vector<128x111xf32>
      %72 = arith.maximumf %70, %71 : vector<128x111xf32>
      %73 = vector.broadcast %68 : vector<128x1xf32> to vector<128x111xf32>
      %74 = arith.addf %67, %73 : vector<128x111xf32>
      %cst_38 = arith.constant 0.000000e+00 : f32
      %75 = vector.broadcast %cst_38 : f32 to vector<128x111xf32>
      %76 = arith.maximumf %74, %75 : vector<128x111xf32>
      %77 = vector.shape_cast %2 : vector<1x111xi1> to vector<1x111xi1>
      %78 = vector.broadcast %77 : vector<1x111xi1> to vector<128x111xi1>
      %79 = vector.broadcast %cst_2 : f32 to vector<128x111xf32>
      %80 = arith.select %78, %79, %76 : vector<128x111xi1>, vector<128x111xf32>
      %81 = vector.extract_strided_slice %72 {offsets = [0, 0], sizes = [128, 110], strides = [1, 1]} : vector<128x111xf32> to vector<128x110xf32>
      %82 = vector.extract_strided_slice %80 {offsets = [0, 0], sizes = [128, 110], strides = [1, 1]} : vector<128x111xf32> to vector<128x110xf32>
      %83 = arith.maximumf %81, %82 : vector<128x110xf32>
      %84 = vector.extract_strided_slice %80 {offsets = [0, 1], sizes = [128, 110], strides = [1, 1]} : vector<128x111xf32> to vector<128x110xf32>
      %85 = arith.maximumf %83, %84 : vector<128x110xf32>
      %86 = vector.extract_strided_slice %85 {offsets = [0, 0], sizes = [32, 110], strides = [1, 1]} : vector<128x110xf32> to vector<32x110xf32>
      %87 = arith.maximumf %arg11, %86 : vector<32x110xf32>
      %88 = vector.extract_strided_slice %85 {offsets = [32, 0], sizes = [32, 110], strides = [1, 1]} : vector<128x110xf32> to vector<32x110xf32>
      %89 = arith.maximumf %87, %88 : vector<32x110xf32>
      %90 = vector.extract_strided_slice %85 {offsets = [32, 0], sizes = [32, 110], strides = [1, 1]} : vector<128x110xf32> to vector<32x110xf32>
      %91 = vector.extract_strided_slice %85 {offsets = [64, 0], sizes = [32, 110], strides = [1, 1]} : vector<128x110xf32> to vector<32x110xf32>
      %92 = arith.maximumf %90, %91 : vector<32x110xf32>
      %93 = vector.extract_strided_slice %85 {offsets = [96, 0], sizes = [32, 110], strides = [1, 1]} : vector<128x110xf32> to vector<32x110xf32>
      %94 = arith.maximumf %92, %93 : vector<32x110xf32>
      %c2_i32 = arith.constant 2 : i32
      %95 = arith.muli %c2_i32, %arg10 : i32
      %96 = tpu.assume_multiple %95, 2 : i32
      %97 = arith.index_cast %96 : i32 to index
      %c0_39 = arith.constant 0 : index
      %c0_40 = arith.constant 0 : index
      %98 = vector.load %arg6[%97, %c0_39, %c0_40] : memref<110x32x110xf32, #tpu.memory_space<vmem>>, vector<1x32x110xf32>
      %99 = vector.shape_cast %98 : vector<1x32x110xf32> to vector<32x110xf32>
      %100 = arith.mulf %89, %99 : vector<32x110xf32>
      %101 = arith.addf %arg12, %100 : vector<32x110xf32>
      %c1_i32_41 = arith.constant 1 : i32
      %102 = arith.addi %96, %c1_i32_41 : i32
      %103 = arith.index_cast %102 : i32 to index
      %c0_42 = arith.constant 0 : index
      %c0_43 = arith.constant 0 : index
      %104 = vector.load %arg6[%103, %c0_42, %c0_43] : memref<110x32x110xf32, #tpu.memory_space<vmem>>, vector<1x32x110xf32>
      %105 = vector.shape_cast %104 : vector<1x32x110xf32> to vector<32x110xf32>
      %106 = arith.mulf %94, %105 : vector<32x110xf32>
      %107 = arith.addf %101, %106 : vector<32x110xf32>
      %108 = arith.index_cast %96 : i32 to index
      %c0_44 = arith.constant 0 : index
      %c0_45 = arith.constant 0 : index
      %109 = vector.load %arg7[%108, %c0_44, %c0_45] : memref<110x32x110xf32, #tpu.memory_space<vmem>>, vector<1x32x110xf32>
      %110 = vector.shape_cast %109 : vector<1x32x110xf32> to vector<32x110xf32>
      %111 = arith.mulf %89, %110 : vector<32x110xf32>
      %112 = arith.addf %arg13, %111 : vector<32x110xf32>
      %c1_i32_46 = arith.constant 1 : i32
      %113 = arith.addi %96, %c1_i32_46 : i32
      %114 = arith.index_cast %113 : i32 to index
      %c0_47 = arith.constant 0 : index
      %c0_48 = arith.constant 0 : index
      %115 = vector.load %arg7[%114, %c0_47, %c0_48] : memref<110x32x110xf32, #tpu.memory_space<vmem>>, vector<1x32x110xf32>
      %116 = vector.shape_cast %115 : vector<1x32x110xf32> to vector<32x110xf32>
      %117 = arith.mulf %94, %116 : vector<32x110xf32>
      %118 = arith.addf %112, %117 : vector<32x110xf32>
      %119 = vector.extract_strided_slice %85 {offsets = [96, 0], sizes = [32, 110], strides = [1, 1]} : vector<128x110xf32> to vector<32x110xf32>
      scf.yield %119, %107, %118 : vector<32x110xf32>, vector<32x110xf32>, vector<32x110xf32>
    }
    %c55_i32_4 = arith.constant 55 : i32
    %cst_5 = arith.constant dense<0.000000e+00> : vector<32xf32>
    %8 = vector.multi_reduction <add>, %7#1, %cst_5 [1] : vector<32x110xf32> to vector<32xf32>
    %9 = vector.shape_cast %8 : vector<32xf32> to vector<32x1xf32>
    %cst_6 = arith.constant dense<0.000000e+00> : vector<1xf32>
    %10 = vector.multi_reduction <add>, %9, %cst_6 [0] : vector<32x1xf32> to vector<1xf32>
    %11 = vector.shape_cast %10 : vector<1xf32> to vector<1x1xf32>
    %cst_7 = arith.constant dense<0.000000e+00> : vector<32xf32>
    %12 = vector.multi_reduction <add>, %7#2, %cst_7 [1] : vector<32x110xf32> to vector<32xf32>
    %13 = vector.shape_cast %12 : vector<32xf32> to vector<32x1xf32>
    %cst_8 = arith.constant dense<0.000000e+00> : vector<1xf32>
    %14 = vector.multi_reduction <add>, %13, %cst_8 [0] : vector<32x1xf32> to vector<1xf32>
    %15 = vector.shape_cast %14 : vector<1xf32> to vector<1x1xf32>
    %16 = tpu.concatenate %11, %15 in 1 : vector<1x1xf32>, vector<1x1xf32> -> vector<1x2xf32>
    %c0 = arith.constant 0 : index
    %c0_9 = arith.constant 0 : index
    %17 = vector.load %arg8[%c0, %c0_9] : memref<1x2xf32, #tpu.memory_space<vmem>>, vector<1x2xf32>
    %18 = arith.addf %16, %17 : vector<1x2xf32>
    %c0_10 = arith.constant 0 : index
    %c0_11 = arith.constant 0 : index
    %c0_12 = arith.constant 0 : index
    %19 = vector.load %arg9[%c0_10, %c0_11, %c0_12] : memref<1x1x2xf32, #tpu.memory_space<vmem>>, vector<1x1x2xf32>
    %20 = vector.shape_cast %19 : vector<1x1x2xf32> to vector<1x2xf32>
    %21 = vector.shape_cast %18 : vector<1x2xf32> to vector<1x1x2xf32>
    tpu.vector_store %arg9[%c0_10, %c0_11, %c0_12], %21 {strides = array<i32>} : memref<1x1x2xf32, #tpu.memory_space<vmem>>, vector<1x1x2xf32>,
    return
  }
  func.func @transform_0(%arg0: i32) -> (i32, i32, i32, i32) {
    %c0_i32 = arith.constant 0 : i32
    %c0_i32_0 = arith.constant 0 : i32
    %c0_i32_1 = arith.constant 0 : i32
    %c0_i32_2 = arith.constant 0 : i32
    return %arg0, %c0_i32, %c0_i32_0, %c0_i32_1 : i32, i32, i32, i32
  }
  func.func @transform_1(%arg0: i32) -> (i32, i32, i32, i32) {
    %c0_i32 = arith.constant 0 : i32
    %c0_i32_0 = arith.constant 0 : i32
    %c0_i32_1 = arith.constant 0 : i32
    %c0_i32_2 = arith.constant 0 : i32
    return %arg0, %c0_i32, %c0_i32_0, %c0_i32_1 : i32, i32, i32, i32
  }
  func.func @transform_2(%arg0: i32) -> (i32, i32) {
    %c0_i32 = arith.constant 0 : i32
    %c0_i32_0 = arith.constant 0 : i32
    %c0_i32_1 = arith.constant 0 : i32
    return %c0_i32, %c0_i32_0 : i32, i32
  }
  func.func @transform_3(%arg0: i32) -> (i32, i32) {
    %c0_i32 = arith.constant 0 : i32
    %c0_i32_0 = arith.constant 0 : i32
    %c0_i32_1 = arith.constant 0 : i32
    return %c0_i32, %c0_i32_0 : i32, i32
  }
  func.func @transform_4(%arg0: i32) -> (i32, i32) {
    %c0_i32 = arith.constant 0 : i32
    %c0_i32_0 = arith.constant 0 : i32
    %c0_i32_1 = arith.constant 0 : i32
    return %c0_i32, %c0_i32_0 : i32, i32
  }
  func.func @transform_5(%arg0: i32) -> (i32, i32, i32) {
    %c0_i32 = arith.constant 0 : i32
    %c0_i32_0 = arith.constant 0 : i32
    %c0_i32_1 = arith.constant 0 : i32
    %c0_i32_2 = arith.constant 0 : i32
    return %c0_i32, %c0_i32_0, %c0_i32_1 : i32, i32, i32
  }
  func.func @transform_6(%arg0: i32) -> (i32, i32, i32) {
    %c0_i32 = arith.constant 0 : i32
    %c0_i32_0 = arith.constant 0 : i32
    %c0_i32_1 = arith.constant 0 : i32
    %c0_i32_2 = arith.constant 0 : i32
    return %c0_i32, %c0_i32_0, %c0_i32_1 : i32, i32, i32
  }
  func.func @transform_7(%arg0: i32) -> (i32, i32) {
    %c0_i32 = arith.constant 0 : i32
    %c0_i32_0 = arith.constant 0 : i32
    %c0_i32_1 = arith.constant 0 : i32
    return %c0_i32, %c0_i32_0 : i32, i32
  }
  func.func @transform_8(%arg0: i32) -> (i32, i32, i32) {
    %c0_i32 = arith.constant 0 : i32
    %c0_i32_0 = arith.constant 0 : i32
    %c0_i32_1 = arith.constant 0 : i32
    return %arg0, %c0_i32, %c0_i32_0 : i32, i32, i32
  }
}

</mosaic_0001>

<llo_original>
// kernel: cnn_forward_prepared.1
$region0: #{cnn_forward_prepared.1}
  #allocation0 [shape = 'u32[]', space=smem, size = 0x4, offset = 0x4, fixed_abs, tag = 'smem constant byte address 0x4 - core index']
  #allocation1 [shape = 'u32[144,128]{1,0:T(1,128)}', space=vmem, size = 0x12000, scoped, tag = 'internal scratch']
  %s0 = inlined_call_operand.vmem [shape: f32[2,3,224,113], index: 0, kind: input, shape index: {}]
  %s1 = inlined_call_operand.vmem [shape: f32[2,3,224,113], index: 1, kind: input, shape index: {}]
  %s2 = inlined_call_operand.vmem [shape: bf16[128,144], index: 2, kind: input, shape index: {}]
  %s3 = inlined_call_operand.vmem [shape: bf16[128,144], index: 3, kind: input, shape index: {}]
  %s4 = inlined_call_operand.vmem [shape: f32[128,1], index: 4, kind: input, shape index: {}]
  %s5 = inlined_call_operand.vmem [shape: f32[110,32,110], index: 5, kind: input, shape index: {}]
  %s6 = inlined_call_operand.vmem [shape: f32[110,32,110], index: 6, kind: input, shape index: {}]
  %s7 = inlined_call_operand.vmem [shape: f32[1,2], index: 7, kind: input, shape index: {}]
  %s8 = inlined_call_operand.hbm [shape: f32[2,1,2], index: 8, kind: output, shape index: {}]
  %s9 = sld [smem:[#allocation0]]
  $region72: #{cnn_forward_prepared.1} parent=0
    _
  %s11 = ssub.s32 1, %s9
  %s12 = scalar_select 0, %s11, %s9
  $region1: #{cnn_forward_prepared.1} parent=0
    #allocation2 [shape = 'u8[1024]{0}', space=vmem, size = 0x400, scoped, tag = 'output window, operand 0']
    #allocation3 [shape = 's32[2]{0}', space=sflag, size = 0x8, scoped, tag = 'scoped memory for cnn_forward_prepared.1']
    %13 = vsyncpa [#allocation3], 0
    %s14 = scalar_lea.sflag [#allocation3], 1
    %15 = vsyncpa %s14, 0
    loop: start=0, step=1, limit=4
    $region2: #{cnn_forward_prepared.1} parent=1 // loop_pre_header
      _
    $region3: #{cnn_forward_prepared.1} parent=1 // loop_header
      %s17 = sphi 0, %s21
      %p18 = scmp.ge.s32.totalorder %s17, 4
      %s27 = sphi 0, %s29
      %s30 = sphi 0, %s27
      %s31 = sphi 0, %s30
      %s47 = sphi 0, %s31
      %s53 = sphi 0, %s55
      %s56 = sphi 0, %s53
      %s57 = sphi 0, %s56
      %s73 = sphi 0, %s57
      %s77 = sphi 0, %s77
      %s79 = sphi 0, %s77
      %s80 = sphi 0, %s79
      %s94 = sphi 0, %s80
      %s98 = sphi 0, %s98
      %s100 = sphi 0, %s98
      %s101 = sphi 0, %s100
      %s115 = sphi 0, %s101
      %s119 = sphi 0, %s119
      %s121 = sphi 0, %s119
      %s122 = sphi 0, %s121
      %s136 = sphi 0, %s122
      %s140 = sphi 0, %s140
      %s142 = sphi 0, %s140
      %s143 = sphi 0, %s142
      %s157 = sphi 0, %s143
      %s161 = sphi 0, %s161
      %s163 = sphi 0, %s161
      %s164 = sphi 0, %s163
      %s178 = sphi 0, %s164
      %s182 = sphi 0, %s182
      %s184 = sphi 0, %s182
      %s185 = sphi 0, %s184
      %s199 = sphi 0, %s185
      %s205 = sphi 0, %s207
      %s208 = sphi 0, %s205
      %s209 = sphi 0, %s208
      %s225 = sphi 0, %s209
    $region4: #{cnn_forward_prepared.1} parent=1 // loop_header_branch
      %20 = sbr.rel (%p18) target = $region8
    $region5: #{cnn_forward_prepared.1} parent=1 // loop_body
      %s22 = ssub.s32 %s17, 1
      %s23 = ssub.s32 %s17, 2
      %s24 = sadd.s32 %s17, 1
      %s25 = ssub.s32 %s17, %s24
      %p26 = scmp.eq.s32.totalorder %s25, 0
      %s28 = sadd.s32 %s27, 1
      %s29 = scalar_select %p26, %s27, %s28
      %p32 = pneg %p26
      %p33 = scmp.eq.s32.totalorder %s17, 1
      %p34 = por %p32, %p33
      %p35 = scmp.ne.s32.totalorder %s27, %s30
      %p36 = scmp.eq.s32.totalorder %s17, 0
      %p37 = por %p35, %p36
      %p38 = scmp.ne.s32.totalorder %s27, %s30
      %p39 = scmp.eq.s32.totalorder %s22, 1
      %p40 = por %p38, %p39
      %p41 = scmp.ne.s32.totalorder %s30, %s31
      %p42 = scmp.eq.s32.totalorder %s22, 0
      %p43 = por %p41, %p42
      %p44 = scmp.ne.s32.totalorder %s30, %s31
      %p45 = scmp.eq.s32.totalorder %s23, 1
      %p46 = por %p44, %p45
      %p48 = scmp.ne.s32.totalorder %s31, %s47
      %p49 = scmp.eq.s32.totalorder %s23, 0
      %p50 = por %p48, %p49
      %s51 = ssub.s32 %s17, %s24
      %p52 = scmp.eq.s32.totalorder %s51, 0
      %s54 = sadd.s32 %s53, 1
      %s55 = scalar_select %p52, %s53, %s54
      %p58 = pneg %p52
      %p59 = scmp.eq.s32.totalorder %s17, 1
      %p60 = por %p58, %p59
      %p61 = scmp.ne.s32.totalorder %s53, %s56
      %p62 = scmp.eq.s32.totalorder %s17, 0
      %p63 = por %p61, %p62
      %p64 = scmp.ne.s32.totalorder %s53, %s56
      %p65 = scmp.eq.s32.totalorder %s22, 1
      %p66 = por %p64, %p65
      %p67 = scmp.ne.s32.totalorder %s56, %s57
      %p68 = scmp.eq.s32.totalorder %s22, 0
      %p69 = por %p67, %p68
      %p70 = scmp.ne.s32.totalorder %s56, %s57
      %p71 = scmp.eq.s32.totalorder %s23, 1
      %p72 = por %p70, %p71
      %p74 = scmp.ne.s32.totalorder %s57, %s73
      %p75 = scmp.eq.s32.totalorder %s23, 0
      %p76 = por %p74, %p75
      %s78 = sadd.s32 %s77, 1
      %p81 = scmp.eq.s32.totalorder %s17, 1
      %p82 = scmp.ne.s32.totalorder %s77, %s79
      %p83 = scmp.eq.s32.totalorder %s17, 0
      %p84 = por %p82, %p83
      %p85 = scmp.ne.s32.totalorder %s77, %s79
      %p86 = scmp.eq.s32.totalorder %s22, 1
      %p87 = por %p85, %p86
      %p88 = scmp.ne.s32.totalorder %s79, %s80
      %p89 = scmp.eq.s32.totalorder %s22, 0
      %p90 = por %p88, %p89
      %p91 = scmp.ne.s32.totalorder %s79, %s80
      %p92 = scmp.eq.s32.totalorder %s23, 1
      %p93 = por %p91, %p92
      %p95 = scmp.ne.s32.totalorder %s80, %s94
      %p96 = scmp.eq.s32.totalorder %s23, 0
      %p97 = por %p95, %p96
      %s99 = sadd.s32 %s98, 1
      %p102 = scmp.eq.s32.totalorder %s17, 1
      %p103 = scmp.ne.s32.totalorder %s98, %s100
      %p104 = scmp.eq.s32.totalorder %s17, 0
      %p105 = por %p103, %p104
      %p106 = scmp.ne.s32.totalorder %s98, %s100
      %p107 = scmp.eq.s32.totalorder %s22, 1
      %p108 = por %p106, %p107
      %p109 = scmp.ne.s32.totalorder %s100, %s101
      %p110 = scmp.eq.s32.totalorder %s22, 0
      %p111 = por %p109, %p110
      %p112 = scmp.ne.s32.totalorder %s100, %s101
      %p113 = scmp.eq.s32.totalorder %s23, 1
      %p114 = por %p112, %p113
      %p116 = scmp.ne.s32.totalorder %s101, %s115
      %p117 = scmp.eq.s32.totalorder %s23, 0
      %p118 = por %p116, %p117
      %s120 = sadd.s32 %s119, 1
      %p123 = scmp.eq.s32.totalorder %s17, 1
      %p124 = scmp.ne.s32.totalorder %s119, %s121
      %p125 = scmp.eq.s32.totalorder %s17, 0
      %p126 = por %p124, %p125
      %p127 = scmp.ne.s32.totalorder %s119, %s121
      %p128 = scmp.eq.s32.totalorder %s22, 1
      %p129 = por %p127, %p128
      %p130 = scmp.ne.s32.totalorder %s121, %s122
      %p131 = scmp.eq.s32.totalorder %s22, 0
      %p132 = por %p130, %p131
      %p133 = scmp.ne.s32.totalorder %s121, %s122
      %p134 = scmp.eq.s32.totalorder %s23, 1
      %p135 = por %p133, %p134
      %p137 = scmp.ne.s32.totalorder %s122, %s136
      %p138 = scmp.eq.s32.totalorder %s23, 0
      %p139 = por %p137, %p138
      %s141 = sadd.s32 %s140, 1
      %p144 = scmp.eq.s32.totalorder %s17, 1
      %p145 = scmp.ne.s32.totalorder %s140, %s142
      %p146 = scmp.eq.s32.totalorder %s17, 0
      %p147 = por %p145, %p146
      %p148 = scmp.ne.s32.totalorder %s140, %s142
      %p149 = scmp.eq.s32.totalorder %s22, 1
      %p150 = por %p148, %p149
      %p151 = scmp.ne.s32.totalorder %s142, %s143
      %p152 = scmp.eq.s32.totalorder %s22, 0
      %p153 = por %p151, %p152
      %p154 = scmp.ne.s32.totalorder %s142, %s143
      %p155 = scmp.eq.s32.totalorder %s23, 1
      %p156 = por %p154, %p155
      %p158 = scmp.ne.s32.totalorder %s143, %s157
      %p159 = scmp.eq.s32.totalorder %s23, 0
      %p160 = por %p158, %p159
      %s162 = sadd.s32 %s161, 1
      %p165 = scmp.eq.s32.totalorder %s17, 1
      %p166 = scmp.ne.s32.totalorder %s161, %s163
      %p167 = scmp.eq.s32.totalorder %s17, 0
      %p168 = por %p166, %p167
      %p169 = scmp.ne.s32.totalorder %s161, %s163
      %p170 = scmp.eq.s32.totalorder %s22, 1
      %p171 = por %p169, %p170
      %p172 = scmp.ne.s32.totalorder %s163, %s164
      %p173 = scmp.eq.s32.totalorder %s22, 0
      %p174 = por %p172, %p173
      %p175 = scmp.ne.s32.totalorder %s163, %s164
      %p176 = scmp.eq.s32.totalorder %s23, 1
      %p177 = por %p175, %p176
      %p179 = scmp.ne.s32.totalorder %s164, %s178
      %p180 = scmp.eq.s32.totalorder %s23, 0
      %p181 = por %p179, %p180
      %s183 = sadd.s32 %s182, 1
      %p186 = scmp.eq.s32.totalorder %s17, 1
      %p187 = scmp.ne.s32.totalorder %s182, %s184
      %p188 = scmp.eq.s32.totalorder %s17, 0
      %p189 = por %p187, %p188
      %p190 = scmp.ne.s32.totalorder %s182, %s184
      %p191 = scmp.eq.s32.totalorder %s22, 1
      %p192 = por %p190, %p191
      %p193 = scmp.ne.s32.totalorder %s184, %s185
      %p194 = scmp.eq.s32.totalorder %s22, 0
      %p195 = por %p193, %p194
      %p196 = scmp.ne.s32.totalorder %s184, %s185
      %p197 = scmp.eq.s32.totalorder %s23, 1
      %p198 = por %p196, %p197
      %p200 = scmp.ne.s32.totalorder %s185, %s199
      %p201 = scmp.eq.s32.totalorder %s23, 0
      %p202 = por %p200, %p201
      %s203 = ssub.s32 %s17, %s24
      %p204 = scmp.eq.s32.totalorder %s203, 0
      %s206 = sadd.s32 %s205, 1
      %s207 = scalar_select %p204, %s205, %s206
      %p210 = pneg %p204
      %p211 = scmp.eq.s32.totalorder %s17, 1
      %p212 = por %p210, %p211
      %p213 = scmp.ne.s32.totalorder %s205, %s208
      %p214 = scmp.eq.s32.totalorder %s17, 0
      %p215 = por %p213, %p214
      %p216 = scmp.ne.s32.totalorder %s205, %s208
      %p217 = scmp.eq.s32.totalorder %s22, 1
      %p218 = por %p216, %p217
      %p219 = scmp.ne.s32.totalorder %s208, %s209
      %p220 = scmp.eq.s32.totalorder %s22, 0
      %p221 = por %p219, %p220
      %p222 = scmp.ne.s32.totalorder %s208, %s209
      %p223 = scmp.eq.s32.totalorder %s23, 1
      %p224 = por %p222, %p223
      %p226 = scmp.ne.s32.totalorder %s209, %s225
      %p227 = scmp.eq.s32.totalorder %s23, 0
      %p228 = por %p226, %p227
      %p229 = scmp.le.s32.totalorder 1, %s17
      %p230 = scmp.lt.s32.totalorder %s17, 3
      %p231 = pnand %p229, %p230
      %p232 = pneg %p231
      // Predicated region
      $region9: #{cnn_forward_prepared.1} parent=5 // pred_check
        _
      $region10: #{cnn_forward_prepared.1} parent=5 // pred_check_branch
        %234 = sbr.rel (%p231) target = $region12
      $region11: #{cnn_forward_prepared.1} parent=5 // pred_region
        %s235 = ssub.s32 %s17, 1
        // Predicated region
        $region13: #{cnn_forward_prepared.1} parent=11 // pred_check
          %p236 = pneg %p90
        $region14: #{cnn_forward_prepared.1} parent=11 // pred_check_branch
          %238 = sbr.rel (%p236) target = $region16
        $region15: #{cnn_forward_prepared.1} parent=11 // pred_region
          _
        $region16: #{cnn_forward_prepared.1} parent=11 // pred_fallthru
          _
        // Predicated region
        $region17: #{cnn_forward_prepared.1} parent=11 // pred_check
          %p239 = pneg %p111
        $region18: #{cnn_forward_prepared.1} parent=11 // pred_check_branch
          %241 = sbr.rel (%p239) target = $region20
        $region19: #{cnn_forward_prepared.1} parent=11 // pred_region
          _
        $region20: #{cnn_forward_prepared.1} parent=11 // pred_fallthru
          _
        // Predicated region
        $region21: #{cnn_forward_prepared.1} parent=11 // pred_check
          %p242 = pneg %p132
        $region22: #{cnn_forward_prepared.1} parent=11 // pred_check_branch
          %244 = sbr.rel (%p242) target = $region24
        $region23: #{cnn_forward_prepared.1} parent=11 // pred_region
          _
        $region24: #{cnn_forward_prepared.1} parent=11 // pred_fallthru
          _
        // Predicated region
        $region25: #{cnn_forward_prepared.1} parent=11 // pred_check
          %p245 = pneg %p153
        $region26: #{cnn_forward_prepared.1} parent=11 // pred_check_branch
          %247 = sbr.rel (%p245) target = $region28
        $region27: #{cnn_forward_prepared.1} parent=11 // pred_region
          _
        $region28: #{cnn_forward_prepared.1} parent=11 // pred_fallthru
          _
        // Predicated region
        $region29: #{cnn_forward_prepared.1} parent=11 // pred_check
          %p248 = pneg %p174
        $region30: #{cnn_forward_prepared.1} parent=11 // pred_check_branch
          %250 = sbr.rel (%p248) target = $region32
        $region31: #{cnn_forward_prepared.1} parent=11 // pred_region
          _
        $region32: #{cnn_forward_prepared.1} parent=11 // pred_fallthru
          _
        // Predicated region
        $region33: #{cnn_forward_prepared.1} parent=11 // pred_check
          %p251 = pneg %p195
        $region34: #{cnn_forward_prepared.1} parent=11 // pred_check_branch
          %253 = sbr.rel (%p251) target = $region36
        $region35: #{cnn_forward_prepared.1} parent=11 // pred_region
          _
        $region36: #{cnn_forward_prepared.1} parent=11 // pred_fallthru
          _
      $region12: #{cnn_forward_prepared.1} parent=5 // pred_fallthru
        _
      %p254 = scmp.lt.s32.totalorder %s17, 2
      // Predicated region
      $region37: #{cnn_forward_prepared.1} parent=5 // pred_check
        %p255 = pneg %p254
      $region38: #{cnn_forward_prepared.1} parent=5 // pred_check_branch
        %257 = sbr.rel (%p255) target = $region40
      $region39: #{cnn_forward_prepared.1} parent=5 // pred_region
        // Predicated region
        $region41: #{cnn_forward_prepared.1} parent=39 // pred_check
          %p258 = pneg %p37
        $region42: #{cnn_forward_prepared.1} parent=39 // pred_check_branch
          %260 = sbr.rel (%p258) target = $region44
        $region43: #{cnn_forward_prepared.1} parent=39 // pred_region
          %p261 = scmp.lt.s32.totalorder %s17, 1
          %s262 = scalar_select %p261, %s17, 1
          %s263 = smul.addr %s262, 84
          %s264 = smul.addr %s263, 8
          %s265 = scalar_lea.vmem %s0, %s264
        $region44: #{cnn_forward_prepared.1} parent=39 // pred_fallthru
          _
        // Predicated region
        $region45: #{cnn_forward_prepared.1} parent=39 // pred_check
          %p266 = pneg %p63
        $region46: #{cnn_forward_prepared.1} parent=39 // pred_check_branch
          %268 = sbr.rel (%p266) target = $region48
        $region47: #{cnn_forward_prepared.1} parent=39 // pred_region
          %p269 = scmp.lt.s32.totalorder %s17, 1
          %s270 = scalar_select %p269, %s17, 1
          %s271 = smul.addr %s270, 84
          %s272 = smul.addr %s271, 8
          %s273 = scalar_lea.vmem %s1, %s272
        $region48: #{cnn_forward_prepared.1} parent=39 // pred_fallthru
          _
      $region40: #{cnn_forward_prepared.1} parent=5 // pred_fallthru
        _
      %p274 = scmp.le.s32.totalorder 1, %s17
      %p275 = scmp.lt.s32.totalorder %s17, 3
      %p276 = pnand %p274, %p275
      %p277 = pneg %p276
      // Predicated region
      $region49: #{cnn_forward_prepared.1} parent=5 // pred_check
        _
      $region50: #{cnn_forward_prepared.1} parent=5 // pred_check_branch
        %279 = sbr.rel (%p276) target = $region52
      $region51: #{cnn_forward_prepared.1} parent=5 // pred_region
        %s280 = ssub.s32 %s17, 1
        %p281 = scmp.lt.s32.totalorder %s22, 1
        %s282 = scalar_select %p281, %s22, 1
        %s283 = smul.addr %s282, 84
        %s284 = smul.addr %s283, 8
        %s285 = scalar_lea.vmem %s0, %s284
        %p286 = pneg %p43
        %p287 = pneg %p40
        %p288 = scmp.lt.s32.totalorder %s22, 1
        %s289 = scalar_select %p288, %s22, 1
        %s290 = smul.addr %s289, 84
        %s291 = smul.addr %s290, 8
        %s292 = scalar_lea.vmem %s1, %s291
        %p293 = pneg %p69
        %p294 = pneg %p66
        %p295 = pneg %p90
        %p296 = pneg %p87
        %p297 = pneg %p111
        %p298 = pneg %p108
        %p299 = pneg %p132
        %p300 = pneg %p129
        %p301 = pneg %p153
        %p302 = pneg %p150
        %p303 = pneg %p174
        %p304 = pneg %p171
        %p305 = pneg %p195
        %p306 = pneg %p192
        %p307 = pneg %p221
        %p308 = pneg %p218
        %s309 = sand.u32 %s208, 1
        %s310 = scalar_lea.sflag [#allocation3], %s309
        %s311 = sand.u32 %s208, 1
        %s312 = scalar_lea.vmem [#allocation2], %s311
        %p313 = scmp.lt.s32.totalorder %s22, 1
        %s314 = scalar_select %p313, %s22, 1
        %s315 = smul.addr %s314, 84
        %s316 = smul.addr %s315, 8
        %s317 = scalar_lea.vmem %s0, %s316
        %p318 = scmp.lt.s32.totalorder %s22, 1
        %s319 = scalar_select %p318, %s22, 1
        %s320 = smul.addr %s319, 84
        %s321 = smul.addr %s320, 8
        %s322 = scalar_lea.vmem %s1, %s321
        %v324 = vlaneseq
        %v325 = vand.u32 %v324, 127
        %vm326 = vcmp.eq.s32.totalorder %v325, 0
        loop: start=0, step=1, limit=55
        $region53: #{cnn_forward_prepared.1} parent=51 // loop_pre_header
          _
        $region54: #{cnn_forward_prepared.1} parent=51 // loop_header
          %s328 = sphi 0, %s332
          %p329 = scmp.ge.s32.totalorder %s328, 55
          %v333 = vphi -inf, %v1068
          %v334 = vphi -inf, %v1069
          %v335 = vphi -inf, %v1070
          %v336 = vphi -inf, %v1071
          %v337 = vphi 0.0, %v1114
          %v338 = vphi 0.0, %v1115
          %v339 = vphi 0.0, %v1116
          %v340 = vphi 0.0, %v1117
          %v341 = vphi 0.0, %v1140
          %v342 = vphi 0.0, %v1141
          %v343 = vphi 0.0, %v1142
          %v344 = vphi 0.0, %v1143
        $region55: #{cnn_forward_prepared.1} parent=51 // loop_header_branch
          %331 = sbr.rel (%p329) target = $region59
        $region56: #{cnn_forward_prepared.1} parent=51 // loop_body
          %s345 = smul.u32 %s328, 4
          %s346 = scalar_lea.vmem %s317, %s345
          %v347 = vld [vmem:[%s346] sm:$0xff]
          %s348 = scalar_lea.vmem %s322, %s345
          %v349 = vld [vmem:[%s348] sm:$0xff]
          %s350 = sadd.s32 %s345, 224
          %s351 = scalar_lea.vmem %s317, %s350
          %v352 = vld [vmem:[%s351] sm:$0xff]
          %s353 = scalar_lea.vmem %s322, %s350
          %v354 = vld [vmem:[%s353] sm:$0xff]
          %s355 = sadd.s32 %s345, 448
          %s356 = scalar_lea.vmem %s317, %s355
          %v357 = vld [vmem:[%s356] sm:$0xff]
          %s358 = scalar_lea.vmem %s322, %s355
          %v359 = vld [vmem:[%s358] sm:$0xff]
          %361 = vrot.lane.b32.xlu0 %v347, 127
          %v362 = vpop.permute.xlu0 %361
          %364 = vrot.lane.b32.xlu0 %v347, 126
          %v365 = vpop.permute.xlu0 %364
          %368 = vrot.lane.b32.xlu0 %v349, 127
          %v369 = vpop.permute.xlu0 %368
          %371 = vrot.lane.b32.xlu0 %v349, 126
          %v372 = vpop.permute.xlu0 %371
          %375 = vrot.lane.b32.xlu0 %v352, 127
          %v376 = vpop.permute.xlu0 %375
          %378 = vrot.lane.b32.xlu0 %v352, 126
          %v379 = vpop.permute.xlu0 %378
          %382 = vrot.lane.b32.xlu0 %v354, 127
          %v383 = vpop.permute.xlu0 %382
          %385 = vrot.lane.b32.xlu0 %v354, 126
          %v386 = vpop.permute.xlu0 %385
          %389 = vrot.lane.b32.xlu0 %v357, 127
          %v390 = vpop.permute.xlu0 %389
          %392 = vrot.lane.b32.xlu0 %v357, 126
          %v393 = vpop.permute.xlu0 %392
          %396 = vrot.lane.b32.xlu0 %v359, 127
          %v397 = vpop.permute.xlu0 %396
          %398 = vrot.lane.b32.xlu0 %v397, 127
          %v399 = vpop.permute.xlu0 %398
          %v402 = vpack.c.bf16 %v362, %v347
          %v403 = vpack.c.bf16 %v349, %v365
          %v404 = vpack.c.bf16 %v372, %v369
          %v405 = vpack.c.bf16 %v376, %v352
          %v406 = vpack.c.bf16 %v354, %v379
          %v407 = vpack.c.bf16 %v386, %v383
          %v408 = vpack.c.bf16 %v390, %v357
          %v409 = vpack.c.bf16 %v359, %v393
          %v410 = vpack.c.bf16 %v399, %v397
          %v411 = vld [vmem:[%s2] sm:$0xff]
          %v412 = vld [vmem:[%s2 + $0x8] sm:$0xff]
          %v413 = vld [vmem:[%s2 + $0x10] sm:$0xff]
          %v414 = vld [vmem:[%s2 + $0x18] sm:$0xff]
          %v415 = vld [vmem:[%s2 + $0x20] sm:$0xff]
          %v416 = vld [vmem:[%s2 + $0x28] sm:$0xff]
          %v417 = vld [vmem:[%s2 + $0x30] sm:$0xff]
          %v418 = vld [vmem:[%s2 + $0x38] sm:$0xff]
          %v419 = vld [vmem:[%s2 + $0x40] sm:$0xff]
          %v420 = vld [vmem:[%s2 + $0x48] sm:$0xff]
          %v421 = vld [vmem:[%s2 + $0x50] sm:$0xff]
          %v422 = vld [vmem:[%s2 + $0x58] sm:$0xff]
          %v423 = vld [vmem:[%s2 + $0x60] sm:$0xff]
          %v424 = vld [vmem:[%s2 + $0x68] sm:$0xff]
          %v425 = vld [vmem:[%s2 + $0x70] sm:$0xff]
          %v426 = vld [vmem:[%s2 + $0x78] sm:$0xff]
          %v427 = vld [vmem:[%s3] sm:$0xff]
          %v428 = vld [vmem:[%s3 + $0x8] sm:$0xff]
          %v429 = vld [vmem:[%s3 + $0x10] sm:$0xff]
          %v430 = vld [vmem:[%s3 + $0x18] sm:$0xff]
          %v431 = vld [vmem:[%s3 + $0x20] sm:$0xff]
          %v432 = vld [vmem:[%s3 + $0x28] sm:$0xff]
          %v433 = vld [vmem:[%s3 + $0x30] sm:$0xff]
          %v434 = vld [vmem:[%s3 + $0x38] sm:$0xff]
          %v435 = vld [vmem:[%s3 + $0x40] sm:$0xff]
          %v436 = vld [vmem:[%s3 + $0x48] sm:$0xff]
          %v437 = vld [vmem:[%s3 + $0x50] sm:$0xff]
          %v438 = vld [vmem:[%s3 + $0x58] sm:$0xff]
          %v439 = vld [vmem:[%s3 + $0x60] sm:$0xff]
          %v440 = vld [vmem:[%s3 + $0x68] sm:$0xff]
          %v441 = vld [vmem:[%s3 + $0x70] sm:$0xff]
          %v442 = vld [vmem:[%s3 + $0x78] sm:$0xff]
          %v443 = vld [vmem:[%s4] sm:$0xff]
          %v444 = vld [vmem:[%s4 + $0x8] sm:$0xff]
          %v445 = vld [vmem:[%s4 + $0x10] sm:$0xff]
          %v446 = vld [vmem:[%s4 + $0x18] sm:$0xff]
          %v447 = vld [vmem:[%s4 + $0x20] sm:$0xff]
          %v448 = vld [vmem:[%s4 + $0x28] sm:$0xff]
          %v449 = vld [vmem:[%s4 + $0x30] sm:$0xff]
          %v450 = vld [vmem:[%s4 + $0x38] sm:$0xff]
          %v451 = vld [vmem:[%s4 + $0x40] sm:$0xff]
          %v452 = vld [vmem:[%s4 + $0x48] sm:$0xff]
          %v453 = vld [vmem:[%s4 + $0x50] sm:$0xff]
          %v454 = vld [vmem:[%s4 + $0x58] sm:$0xff]
          %v455 = vld [vmem:[%s4 + $0x60] sm:$0xff]
          %v456 = vld [vmem:[%s4 + $0x68] sm:$0xff]
          %v457 = vld [vmem:[%s4 + $0x70] sm:$0xff]
          %v458 = vld [vmem:[%s4 + $0x78] sm:$0xff]
          %460 = vset.pattern.permute.xlu0 0
          %461 = vperm.xlu0 %460, %v443
          %v462 = vpop.permute.xlu0 %461
          %465 = vset.pattern.permute.xlu0 0
          %466 = vperm.xlu0 %465, %v444
          %v467 = vpop.permute.xlu0 %466
          %470 = vset.pattern.permute.xlu0 0
          %471 = vperm.xlu0 %470, %v445
          %v472 = vpop.permute.xlu0 %471
          %475 = vset.pattern.permute.xlu0 0
          %476 = vperm.xlu0 %475, %v446
          %v477 = vpop.permute.xlu0 %476
          %480 = vset.pattern.permute.xlu0 0
          %481 = vperm.xlu0 %480, %v447
          %v482 = vpop.permute.xlu0 %481
          %485 = vset.pattern.permute.xlu0 0
          %486 = vperm.xlu0 %485, %v448
          %v487 = vpop.permute.xlu0 %486
          %490 = vset.pattern.permute.xlu0 0
          %491 = vperm.xlu0 %490, %v449
          %v492 = vpop.permute.xlu0 %491
          %495 = vset.pattern.permute.xlu0 0
          %496 = vperm.xlu0 %495, %v450
          %v497 = vpop.permute.xlu0 %496
          %500 = vset.pattern.permute.xlu0 0
          %501 = vperm.xlu0 %500, %v451
          %v502 = vpop.permute.xlu0 %501
          %505 = vset.pattern.permute.xlu0 0
          %506 = vperm.xlu0 %505, %v452
          %v507 = vpop.permute.xlu0 %506
          %510 = vset.pattern.permute.xlu0 0
          %511 = vperm.xlu0 %510, %v453
          %v512 = vpop.permute.xlu0 %511
          %515 = vset.pattern.permute.xlu0 0
          %516 = vperm.xlu0 %515, %v454
          %v517 = vpop.permute.xlu0 %516
          %520 = vset.pattern.permute.xlu0 0
          %521 = vperm.xlu0 %520, %v455
          %v522 = vpop.permute.xlu0 %521
          %525 = vset.pattern.permute.xlu0 0
          %526 = vperm.xlu0 %525, %v456
          %v527 = vpop.permute.xlu0 %526
          %530 = vset.pattern.permute.xlu0 0
          %531 = vperm.xlu0 %530, %v457
          %v532 = vpop.permute.xlu0 %531
          %535 = vset.pattern.permute.xlu0 0
          %536 = vperm.xlu0 %535, %v458
          %v537 = vpop.permute.xlu0 %536
          %v555 = vunpack.c.l.b16 %v411
          %v556 = vunpack.c.h.b16 %v411
          %v557 = vunpack.c.l.b16 %v412
          %v558 = vunpack.c.h.b16 %v412
          %v559 = vunpack.c.l.b16 %v413
          %v560 = vunpack.c.h.b16 %v413
          %v561 = vunpack.c.l.b16 %v414
          %v562 = vunpack.c.h.b16 %v414
          %v563 = vunpack.c.l.b16 %v415
          %v564 = vunpack.c.h.b16 %v415
          %v565 = vunpack.c.l.b16 %v416
          %v566 = vunpack.c.h.b16 %v416
          %v567 = vunpack.c.l.b16 %v417
          %v568 = vunpack.c.h.b16 %v417
          %v569 = vunpack.c.l.b16 %v418
          %v570 = vunpack.c.h.b16 %v418
          %v571 = vunpack.c.l.b16 %v419
          %v572 = vunpack.c.h.b16 %v419
          %v573 = vunpack.c.l.b16 %v420
          %v574 = vunpack.c.h.b16 %v420
          %v575 = vunpack.c.l.b16 %v421
          %v576 = vunpack.c.h.b16 %v421
          %v577 = vunpack.c.l.b16 %v422
          %v578 = vunpack.c.h.b16 %v422
          %v579 = vunpack.c.l.b16 %v423
          %v580 = vunpack.c.h.b16 %v423
          %v581 = vunpack.c.l.b16 %v424
          %v582 = vunpack.c.h.b16 %v424
          %v583 = vunpack.c.l.b16 %v425
          %v584 = vunpack.c.h.b16 %v425
          %v585 = vunpack.c.l.b16 %v426
          %v586 = vunpack.c.h.b16 %v426
          %v587 = vpack.c.b16 %v557, %v555
          %v588 = vpack.c.b16 %v558, %v556
          %v589 = vpack.c.b16 %v561, %v559
          %v590 = vpack.c.b16 %v562, %v560
          %v591 = vpack.c.b16 %v565, %v563
          %v592 = vpack.c.b16 %v566, %v564
          %v593 = vpack.c.b16 %v569, %v567
          %v594 = vpack.c.b16 %v570, %v568
          %v595 = vpack.c.b16 %v573, %v571
          %v596 = vpack.c.b16 %v574, %v572
          %v597 = vpack.c.b16 %v577, %v575
          %v598 = vpack.c.b16 %v578, %v576
          %v599 = vpack.c.b16 %v581, %v579
          %v600 = vpack.c.b16 %v582, %v580
          %v601 = vpack.c.b16 %v585, %v583
          %v602 = vpack.c.b16 %v586, %v584
          %vm611 = vcmask 130048
          %v613 = vsel %vm611, %v588, 0
          %v616 = vsel %vm611, %v590, 0
          %v619 = vsel %vm611, %v592, 0
          %v622 = vsel %vm611, %v594, 0
          %v625 = vsel %vm611, %v596, 0
          %v628 = vsel %vm611, %v598, 0
          %v631 = vsel %vm611, %v600, 0
          %v634 = vsel %vm611, %v602, 0
          %636 = vmatprep.subr.bf16.mxu0 0
          %637 = vmatpush1.bf16.msra.mxu0 %v402
          %638 = vmatprep.subr.bf16.mxu0 0
          %639 = vmatpush1.bf16.msra.mxu0 %v403
          %640 = vmatprep.subr.bf16.mxu0 0
          %641 = vmatpush1.bf16.msra.mxu0 %v404
          %642 = vmatprep.subr.bf16.mxu0 0
          %643 = vmatpush1.bf16.msra.mxu0 %v405
          %644 = vmatprep.subr.bf16.mxu0 0
          %645 = vmatpush1.bf16.msra.mxu0 %v406
          %646 = vmatprep.subr.bf16.mxu0 0
          %647 = vmatpush1.bf16.msra.mxu0 %v407
          %648 = vmatprep.subr.bf16.mxu0 0
          %649 = vmatpush1.bf16.msra.mxu0 %v408
          %650 = vmatprep.subr.bf16.mxu0 0
          %651 = vmatpush1.bf16.msra.mxu0 %v409
          %652 = vmatprep.subr.bf16.mxu0 0
          %653 = vmatpush1.bf16.msra.mxu0 %v410
          %654 = vmatprep.subr.bf16.mxu0 0
          %655 = vmatpush1.bf16.msra.mxu0 0
          %656 = vmatprep.subr.bf16.mxu0 0
          %657 = vmatpush1.bf16.msra.mxu0 0
          %658 = vmatprep.subr.bf16.mxu0 0
          %659 = vmatpush1.bf16.msra.mxu0 0
          %660 = vmatprep.subr.bf16.mxu0 0
          %661 = vmatpush1.bf16.msra.mxu0 0
          %662 = vmatprep.subr.bf16.mxu0 0
          %663 = vmatpush1.bf16.msra.mxu0 0
          %664 = vmatprep.subr.bf16.mxu0 0
          %665 = vmatpush1.bf16.msra.mxu0 0
          %666 = vmatprep.subr.bf16.mxu0 0
          %667 = vmatpush1.bf16.msra.mxu0 0
          %668 = vmatprep.mubr.bf16.mxu0 %v613
          %669 = vmatmul.mubr.bf16.gmra.mrb[0].mxu0 %v587
          %v670 = vpop.f32.mrb[0].mxu0
          %v671 = vadd.f32 %v462, %v670
          %v672 = vpop.f32.mrb[0].mxu0
          %v673 = vpop.f32.mrb[0].mxu0
          %v674 = vadd.f32 %v467, %v673
          %v675 = vpop.f32.mrb[0].mxu0
          %676 = vmatprep.mubr.bf16.mxu0 %v616
          %677 = vmatmul.mubr.bf16.gmra.mrb[0].mxu0 %v589
          %v678 = vpop.f32.mrb[0].mxu0
          %v679 = vadd.f32 %v472, %v678
          %v680 = vpop.f32.mrb[0].mxu0
          %v681 = vpop.f32.mrb[0].mxu0
          %v682 = vadd.f32 %v477, %v681
          %v683 = vpop.f32.mrb[0].mxu0
          %684 = vmatprep.mubr.bf16.mxu0 %v619
          %685 = vmatmul.mubr.bf16.gmra.mrb[0].mxu0 %v591
          %v686 = vpop.f32.mrb[0].mxu0
          %v687 = vadd.f32 %v482, %v686
          %v688 = vpop.f32.mrb[0].mxu0
          %v689 = vpop.f32.mrb[0].mxu0
          %v690 = vadd.f32 %v487, %v689
          %v691 = vpop.f32.mrb[0].mxu0
          %692 = vmatprep.mubr.bf16.mxu0 %v622
          %693 = vmatmul.mubr.bf16.gmra.mrb[0].mxu0 %v593
          %v694 = vpop.f32.mrb[0].mxu0
          %v695 = vadd.f32 %v492, %v694
          %v696 = vpop.f32.mrb[0].mxu0
          %v697 = vpop.f32.mrb[0].mxu0
          %v698 = vadd.f32 %v497, %v697
          %v699 = vpop.f32.mrb[0].mxu0
          %700 = vmatprep.mubr.bf16.mxu0 %v625
          %701 = vmatmul.mubr.bf16.gmra.mrb[0].mxu0 %v595
          %v702 = vpop.f32.mrb[0].mxu0
          %v703 = vadd.f32 %v502, %v702
          %v704 = vpop.f32.mrb[0].mxu0
          %v705 = vpop.f32.mrb[0].mxu0
          %v706 = vadd.f32 %v507, %v705
          %v707 = vpop.f32.mrb[0].mxu0
          %708 = vmatprep.mubr.bf16.mxu0 %v628
          %709 = vmatmul.mubr.bf16.gmra.mrb[0].mxu0 %v597
          %v710 = vpop.f32.mrb[0].mxu0
          %v711 = vadd.f32 %v512, %v710
          %v712 = vpop.f32.mrb[0].mxu0
          %v713 = vpop.f32.mrb[0].mxu0
          %v714 = vadd.f32 %v517, %v713
          %v715 = vpop.f32.mrb[0].mxu0
          %716 = vmatprep.mubr.bf16.mxu0 %v631
          %717 = vmatmul.mubr.bf16.gmra.mrb[0].mxu0 %v599
          %v718 = vpop.f32.mrb[0].mxu0
          %v719 = vadd.f32 %v522, %v718
          %v720 = vpop.f32.mrb[0].mxu0
          %v721 = vpop.f32.mrb[0].mxu0
          %v722 = vadd.f32 %v527, %v721
          %v723 = vpop.f32.mrb[0].mxu0
          %724 = vmatprep.mubr.bf16.mxu0 %v634
          %725 = vmatmul.mubr.bf16.gmra.mrb[0].mxu0 %v601
          %v726 = vpop.f32.mrb[0].mxu0
          %v727 = vadd.f32 %v532, %v726
          %v728 = vpop.f32.mrb[0].mxu0
          %v729 = vpop.f32.mrb[0].mxu0
          %v730 = vadd.f32 %v537, %v729
          %v731 = vpop.f32.mrb[0].mxu0
          %732 = vdwg.mxu0
          %v733 = vmax.f32 %v671, 0.0
          %v734 = vmax.f32 %v674, 0.0
          %v735 = vmax.f32 %v679, 0.0
          %v736 = vmax.f32 %v682, 0.0
          %v737 = vmax.f32 %v687, 0.0
          %v738 = vmax.f32 %v690, 0.0
          %v739 = vmax.f32 %v695, 0.0
          %v740 = vmax.f32 %v698, 0.0
          %v741 = vmax.f32 %v703, 0.0
          %v742 = vmax.f32 %v706, 0.0
          %v743 = vmax.f32 %v711, 0.0
          %v744 = vmax.f32 %v714, 0.0
          %v745 = vmax.f32 %v719, 0.0
          %v746 = vmax.f32 %v722, 0.0
          %v747 = vmax.f32 %v727, 0.0
          %v748 = vmax.f32 %v730, 0.0
          %v765 = vunpack.c.l.b16 %v427
          %v766 = vunpack.c.h.b16 %v427
          %v767 = vunpack.c.l.b16 %v428
          %v768 = vunpack.c.h.b16 %v428
          %v769 = vunpack.c.l.b16 %v429
          %v770 = vunpack.c.h.b16 %v429
          %v771 = vunpack.c.l.b16 %v430
          %v772 = vunpack.c.h.b16 %v430
          %v773 = vunpack.c.l.b16 %v431
          %v774 = vunpack.c.h.b16 %v431
          %v775 = vunpack.c.l.b16 %v432
          %v776 = vunpack.c.h.b16 %v432
          %v777 = vunpack.c.l.b16 %v433
          %v778 = vunpack.c.h.b16 %v433
          %v779 = vunpack.c.l.b16 %v434
          %v780 = vunpack.c.h.b16 %v434
          %v781 = vunpack.c.l.b16 %v435
          %v782 = vunpack.c.h.b16 %v435
          %v783 = vunpack.c.l.b16 %v436
          %v784 = vunpack.c.h.b16 %v436
          %v785 = vunpack.c.l.b16 %v437
          %v786 = vunpack.c.h.b16 %v437
          %v787 = vunpack.c.l.b16 %v438
          %v788 = vunpack.c.h.b16 %v438
          %v789 = vunpack.c.l.b16 %v439
          %v790 = vunpack.c.h.b16 %v439
          %v791 = vunpack.c.l.b16 %v440
          %v792 = vunpack.c.h.b16 %v440
          %v793 = vunpack.c.l.b16 %v441
          %v794 = vunpack.c.h.b16 %v441
          %v795 = vunpack.c.l.b16 %v442
          %v796 = vunpack.c.h.b16 %v442
          %v797 = vpack.c.b16 %v767, %v765
          %v798 = vpack.c.b16 %v768, %v766
          %v799 = vpack.c.b16 %v771, %v769
          %v800 = vpack.c.b16 %v772, %v770
          %v801 = vpack.c.b16 %v775, %v773
          %v802 = vpack.c.b16 %v776, %v774
          %v803 = vpack.c.b16 %v779, %v777
          %v804 = vpack.c.b16 %v780, %v778
          %v805 = vpack.c.b16 %v783, %v781
          %v806 = vpack.c.b16 %v784, %v782
          %v807 = vpack.c.b16 %v787, %v785
          %v808 = vpack.c.b16 %v788, %v786
          %v809 = vpack.c.b16 %v791, %v789
          %v810 = vpack.c.b16 %v792, %v790
          %v811 = vpack.c.b16 %v795, %v793
          %v812 = vpack.c.b16 %v796, %v794
          %v822 = vsel %vm611, %v798, 0
          %v825 = vsel %vm611, %v800, 0
          %v828 = vsel %vm611, %v802, 0
          %v831 = vsel %vm611, %v804, 0
          %v834 = vsel %vm611, %v806, 0
          %v837 = vsel %vm611, %v808, 0
          %v840 = vsel %vm611, %v810, 0
          %v843 = vsel %vm611, %v812, 0
          %845 = vmatprep.subr.bf16.mxu0 0
          %846 = vmatpush1.bf16.msra.mxu0 %v402
          %847 = vmatprep.subr.bf16.mxu0 0
          %848 = vmatpush1.bf16.msra.mxu0 %v403
          %849 = vmatprep.subr.bf16.mxu0 0
          %850 = vmatpush1.bf16.msra.mxu0 %v404
          %851 = vmatprep.subr.bf16.mxu0 0
          %852 = vmatpush1.bf16.msra.mxu0 %v405
          %853 = vmatprep.subr.bf16.mxu0 0
          %854 = vmatpush1.bf16.msra.mxu0 %v406
          %855 = vmatprep.subr.bf16.mxu0 0
          %856 = vmatpush1.bf16.msra.mxu0 %v407
          %857 = vmatprep.subr.bf16.mxu0 0
          %858 = vmatpush1.bf16.msra.mxu0 %v408
          %859 = vmatprep.subr.bf16.mxu0 0
          %860 = vmatpush1.bf16.msra.mxu0 %v409
          %861 = vmatprep.subr.bf16.mxu0 0
          %862 = vmatpush1.bf16.msra.mxu0 %v410
          %863 = vmatprep.subr.bf16.mxu0 0
          %864 = vmatpush1.bf16.msra.mxu0 0
          %865 = vmatprep.subr.bf16.mxu0 0
          %866 = vmatpush1.bf16.msra.mxu0 0
          %867 = vmatprep.subr.bf16.mxu0 0
          %868 = vmatpush1.bf16.msra.mxu0 0
          %869 = vmatprep.subr.bf16.mxu0 0
          %870 = vmatpush1.bf16.msra.mxu0 0
          %871 = vmatprep.subr.bf16.mxu0 0
          %872 = vmatpush1.bf16.msra.mxu0 0
          %873 = vmatprep.subr.bf16.mxu0 0
          %874 = vmatpush1.bf16.msra.mxu0 0
          %875 = vmatprep.subr.bf16.mxu0 0
          %876 = vmatpush1.bf16.msra.mxu0 0
          %877 = vmatprep.mubr.bf16.mxu0 %v822
          %878 = vmatmul.mubr.bf16.gmra.mrb[0].mxu0 %v797
          %v879 = vpop.f32.mrb[0].mxu0
          %v880 = vadd.f32 %v462, %v879
          %v881 = vpop.f32.mrb[0].mxu0
          %v882 = vpop.f32.mrb[0].mxu0
          %v883 = vadd.f32 %v467, %v882
          %v884 = vpop.f32.mrb[0].mxu0
          %885 = vmatprep.mubr.bf16.mxu0 %v825
          %886 = vmatmul.mubr.bf16.gmra.mrb[0].mxu0 %v799
          %v887 = vpop.f32.mrb[0].mxu0
          %v888 = vadd.f32 %v472, %v887
          %v889 = vpop.f32.mrb[0].mxu0
          %v890 = vpop.f32.mrb[0].mxu0
          %v891 = vadd.f32 %v477, %v890
          %v892 = vpop.f32.mrb[0].mxu0
          %893 = vmatprep.mubr.bf16.mxu0 %v828
          %894 = vmatmul.mubr.bf16.gmra.mrb[0].mxu0 %v801
          %v895 = vpop.f32.mrb[0].mxu0
          %v896 = vadd.f32 %v482, %v895
          %v897 = vpop.f32.mrb[0].mxu0
          %v898 = vpop.f32.mrb[0].mxu0
          %v899 = vadd.f32 %v487, %v898
          %v900 = vpop.f32.mrb[0].mxu0
          %901 = vmatprep.mubr.bf16.mxu0 %v831
          %902 = vmatmul.mubr.bf16.gmra.mrb[0].mxu0 %v803
          %v903 = vpop.f32.mrb[0].mxu0
          %v904 = vadd.f32 %v492, %v903
          %v905 = vpop.f32.mrb[0].mxu0
          %v906 = vpop.f32.mrb[0].mxu0
          %v907 = vadd.f32 %v497, %v906
          %v908 = vpop.f32.mrb[0].mxu0
          %909 = vmatprep.mubr.bf16.mxu0 %v834
          %910 = vmatmul.mubr.bf16.gmra.mrb[0].mxu0 %v805
          %v911 = vpop.f32.mrb[0].mxu0
          %v912 = vadd.f32 %v502, %v911
          %v913 = vpop.f32.mrb[0].mxu0
          %v914 = vpop.f32.mrb[0].mxu0
          %v915 = vadd.f32 %v507, %v914
          %v916 = vpop.f32.mrb[0].mxu0
          %917 = vmatprep.mubr.bf16.mxu0 %v837
          %918 = vmatmul.mubr.bf16.gmra.mrb[0].mxu0 %v807
          %v919 = vpop.f32.mrb[0].mxu0
          %v920 = vadd.f32 %v512, %v919
          %v921 = vpop.f32.mrb[0].mxu0
          %v922 = vpop.f32.mrb[0].mxu0
          %v923 = vadd.f32 %v517, %v922
          %v924 = vpop.f32.mrb[0].mxu0
          %925 = vmatprep.mubr.bf16.mxu0 %v840
          %926 = vmatmul.mubr.bf16.gmra.mrb[0].mxu0 %v809
          %v927 = vpop.f32.mrb[0].mxu0
          %v928 = vadd.f32 %v522, %v927
          %v929 = vpop.f32.mrb[0].mxu0
          %v930 = vpop.f32.mrb[0].mxu0
          %v931 = vadd.f32 %v527, %v930
          %v932 = vpop.f32.mrb[0].mxu0
          %933 = vmatprep.mubr.bf16.mxu0 %v843
          %934 = vmatmul.mubr.bf16.gmra.mrb[0].mxu0 %v811
          %v935 = vpop.f32.mrb[0].mxu0
          %v936 = vadd.f32 %v532, %v935
          %v937 = vpop.f32.mrb[0].mxu0
          %v938 = vpop.f32.mrb[0].mxu0
          %v939 = vadd.f32 %v537, %v938
          %v940 = vpop.f32.mrb[0].mxu0
          %941 = vdwg.mxu0
          %v942 = vmax.f32 %v880, 0.0
          %v943 = vmax.f32 %v883, 0.0
          %v944 = vmax.f32 %v888, 0.0
          %v945 = vmax.f32 %v891, 0.0
          %v946 = vmax.f32 %v896, 0.0
          %v947 = vmax.f32 %v899, 0.0
          %v948 = vmax.f32 %v904, 0.0
          %v949 = vmax.f32 %v907, 0.0
          %v950 = vmax.f32 %v912, 0.0
          %v951 = vmax.f32 %v915, 0.0
          %v952 = vmax.f32 %v920, 0.0
          %v953 = vmax.f32 %v923, 0.0
          %v954 = vmax.f32 %v928, 0.0
          %v955 = vmax.f32 %v931, 0.0
          %v956 = vmax.f32 %v936, 0.0
          %v957 = vmax.f32 %v939, 0.0
          %v958 = vsel %vm326, 1, 0
          %vm959 = vcmp.eq.s32.totalorder %v958, 1
          %v960 = vsel %vm959, -inf, %v942
          %v961 = vsel %vm959, -inf, %v943
          %v962 = vsel %vm959, -inf, %v944
          %v963 = vsel %vm959, -inf, %v945
          %v964 = vsel %vm959, -inf, %v946
          %v965 = vsel %vm959, -inf, %v947
          %v966 = vsel %vm959, -inf, %v948
          %v967 = vsel %vm959, -inf, %v949
          %v968 = vsel %vm959, -inf, %v950
          %v969 = vsel %vm959, -inf, %v951
          %v970 = vsel %vm959, -inf, %v952
          %v971 = vsel %vm959, -inf, %v953
          %v972 = vsel %vm959, -inf, %v954
          %v973 = vsel %vm959, -inf, %v955
          %v974 = vsel %vm959, -inf, %v956
          %v975 = vsel %vm959, -inf, %v957
          %v976 = vmax.f32 %v733, %v960
          %v977 = vmax.f32 %v734, %v961
          %v978 = vmax.f32 %v735, %v962
          %v979 = vmax.f32 %v736, %v963
          %v980 = vmax.f32 %v737, %v964
          %v981 = vmax.f32 %v738, %v965
          %v982 = vmax.f32 %v739, %v966
          %v983 = vmax.f32 %v740, %v967
          %v984 = vmax.f32 %v741, %v968
          %v985 = vmax.f32 %v742, %v969
          %v986 = vmax.f32 %v743, %v970
          %v987 = vmax.f32 %v744, %v971
          %v988 = vmax.f32 %v745, %v972
          %v989 = vmax.f32 %v746, %v973
          %v990 = vmax.f32 %v747, %v974
          %v991 = vmax.f32 %v748, %v975
          %1008 = vrot.lane.b32.xlu0 %v960, 127
          %v1009 = vpop.permute.xlu0 %1008
          %1010 = vrot.lane.b32.xlu0 %v961, 127
          %v1011 = vpop.permute.xlu0 %1010
          %1012 = vrot.lane.b32.xlu0 %v962, 127
          %v1013 = vpop.permute.xlu0 %1012
          %1014 = vrot.lane.b32.xlu0 %v963, 127
          %v1015 = vpop.permute.xlu0 %1014
          %1016 = vrot.lane.b32.xlu0 %v964, 127
          %v1017 = vpop.permute.xlu0 %1016
          %1018 = vrot.lane.b32.xlu0 %v965, 127
          %v1019 = vpop.permute.xlu0 %1018
          %1020 = vrot.lane.b32.xlu0 %v966, 127
          %v1021 = vpop.permute.xlu0 %1020
          %1022 = vrot.lane.b32.xlu0 %v967, 127
          %v1023 = vpop.permute.xlu0 %1022
          %1024 = vrot.lane.b32.xlu0 %v968, 127
          %v1025 = vpop.permute.xlu0 %1024
          %1026 = vrot.lane.b32.xlu0 %v969, 127
          %v1027 = vpop.permute.xlu0 %1026
          %1028 = vrot.lane.b32.xlu0 %v970, 127
          %v1029 = vpop.permute.xlu0 %1028
          %1030 = vrot.lane.b32.xlu0 %v971, 127
          %v1031 = vpop.permute.xlu0 %1030
          %1032 = vrot.lane.b32.xlu0 %v972, 127
          %v1033 = vpop.permute.xlu0 %1032
          %1034 = vrot.lane.b32.xlu0 %v973, 127
          %v1035 = vpop.permute.xlu0 %1034
          %1036 = vrot.lane.b32.xlu0 %v974, 127
          %v1037 = vpop.permute.xlu0 %1036
          %1038 = vrot.lane.b32.xlu0 %v975, 127
          %v1039 = vpop.permute.xlu0 %1038
          %v1056 = vmax.f32 %v976, %v1009
          %v1057 = vmax.f32 %v977, %v1011
          %v1058 = vmax.f32 %v978, %v1013
          %v1059 = vmax.f32 %v979, %v1015
          %v1060 = vmax.f32 %v980, %v1017
          %v1061 = vmax.f32 %v981, %v1019
          %v1062 = vmax.f32 %v982, %v1021
          %v1063 = vmax.f32 %v983, %v1023
          %v1064 = vmax.f32 %v984, %v1025
          %v1065 = vmax.f32 %v985, %v1027
          %v1066 = vmax.f32 %v986, %v1029
          %v1067 = vmax.f32 %v987, %v1031
          %v1068 = vmax.f32 %v988, %v1033
          %v1069 = vmax.f32 %v989, %v1035
          %v1070 = vmax.f32 %v990, %v1037
          %v1071 = vmax.f32 %v991, %v1039
          %v1072 = vmax.f32 %v333, %v1056
          %v1073 = vmax.f32 %v334, %v1057
          %v1074 = vmax.f32 %v335, %v1058
          %v1075 = vmax.f32 %v336, %v1059
          %v1076 = vmax.f32 %v1072, %v1060
          %v1077 = vmax.f32 %v1073, %v1061
          %v1078 = vmax.f32 %v1074, %v1062
          %v1079 = vmax.f32 %v1075, %v1063
          %v1080 = vmax.f32 %v1060, %v1064
          %v1081 = vmax.f32 %v1061, %v1065
          %v1082 = vmax.f32 %v1062, %v1066
          %v1083 = vmax.f32 %v1063, %v1067
          %v1084 = vmax.f32 %v1080, %v1068
          %v1085 = vmax.f32 %v1081, %v1069
          %v1086 = vmax.f32 %v1082, %v1070
          %v1087 = vmax.f32 %v1083, %v1071
          %s1088 = smul.u32 %s328, 2
          %s1089 = smul.u32 %s1088, 32
          %s1090 = scalar_lea.vmem %s5, %s1089
          %v1091 = vld [vmem:[%s1090] sm:$0xff]
          %v1092 = vld [vmem:[%s1090 + $0x8] sm:$0xff]
          %v1093 = vld [vmem:[%s1090 + $0x10] sm:$0xff]
          %v1094 = vld [vmem:[%s1090 + $0x18] sm:$0xff]
          %v1095 = vmul.f32 %v1076, %v1091
          %v1096 = vmul.f32 %v1077, %v1092
          %v1097 = vmul.f32 %v1078, %v1093
          %v1098 = vmul.f32 %v1079, %v1094
          %v1099 = vadd.f32 %v337, %v1095
          %v1100 = vadd.f32 %v338, %v1096
          %v1101 = vadd.f32 %v339, %v1097
          %v1102 = vadd.f32 %v340, %v1098
          %s1103 = sadd.s32 %s1088, 1
          %s1104 = smul.u32 %s1103, 32
          %s1105 = scalar_lea.vmem %s5, %s1104
          %v1106 = vld [vmem:[%s1105] sm:$0xff]
          %v1107 = vld [vmem:[%s1105 + $0x8] sm:$0xff]
          %v1108 = vld [vmem:[%s1105 + $0x10] sm:$0xff]
          %v1109 = vld [vmem:[%s1105 + $0x18] sm:$0xff]
          %v1110 = vmul.f32 %v1084, %v1106
          %v1111 = vmul.f32 %v1085, %v1107
          %v1112 = vmul.f32 %v1086, %v1108
          %v1113 = vmul.f32 %v1087, %v1109
          %v1114 = vadd.f32 %v1099, %v1110
          %v1115 = vadd.f32 %v1100, %v1111
          %v1116 = vadd.f32 %v1101, %v1112
          %v1117 = vadd.f32 %v1102, %v1113
          %s1118 = scalar_lea.vmem %s6, %s1089
          %v1119 = vld [vmem:[%s1118] sm:$0xff]
          %v1120 = vld [vmem:[%s1118 + $0x8] sm:$0xff]
          %v1121 = vld [vmem:[%s1118 + $0x10] sm:$0xff]
          %v1122 = vld [vmem:[%s1118 + $0x18] sm:$0xff]
          %v1123 = vmul.f32 %v1076, %v1119
          %v1124 = vmul.f32 %v1077, %v1120
          %v1125 = vmul.f32 %v1078, %v1121
          %v1126 = vmul.f32 %v1079, %v1122
          %v1127 = vadd.f32 %v341, %v1123
          %v1128 = vadd.f32 %v342, %v1124
          %v1129 = vadd.f32 %v343, %v1125
          %v1130 = vadd.f32 %v344, %v1126
          %s1131 = scalar_lea.vmem %s6, %s1104
          %v1132 = vld [vmem:[%s1131] sm:$0xff]
          %v1133 = vld [vmem:[%s1131 + $0x8] sm:$0xff]
          %v1134 = vld [vmem:[%s1131 + $0x10] sm:$0xff]
          %v1135 = vld [vmem:[%s1131 + $0x18] sm:$0xff]
          %v1136 = vmul.f32 %v1084, %v1132
          %v1137 = vmul.f32 %v1085, %v1133
          %v1138 = vmul.f32 %v1086, %v1134
          %v1139 = vmul.f32 %v1087, %v1135
          %v1140 = vadd.f32 %v1127, %v1136
          %v1141 = vadd.f32 %v1128, %v1137
          %v1142 = vadd.f32 %v1129, %v1138
          %v1143 = vadd.f32 %v1130, %v1139
        $region57: #{cnn_forward_prepared.1} parent=51 // loop_footer
          %s332 = sadd.s32 1, %s328
        $region58: #{cnn_forward_prepared.1} parent=51 // loop_footer_branch
          %327 = sbr.rel target = $region54
        $region59: #{cnn_forward_prepared.1} parent=51 // loop_exit
          _
        %vm1144 = vcmask 900096
        %v1145 = vsel %vm1144, %v337, 0.0
        %1146 = vadd.xlane.f32.xlu0 %v1145
        %v1147 = vpop.xlane.xlu0 %1146
        %v1148 = vsel %vm1144, %v338, 0.0
        %1149 = vadd.xlane.f32.xlu0 %v1148
        %v1150 = vpop.xlane.xlu0 %1149
        %v1151 = vsel %vm1144, %v339, 0.0
        %1152 = vadd.xlane.f32.xlu0 %v1151
        %v1153 = vpop.xlane.xlu0 %1152
        %v1154 = vsel %vm1144, %v340, 0.0
        %1155 = vadd.xlane.f32.xlu0 %v1154
        %v1156 = vpop.xlane.xlu0 %1155
        %v1157 = vadd.f32 %v1147, %v1150
        %v1158 = vadd.f32 %v1157, %v1153
        %v1159 = vadd.f32 %v1158, %v1156
        %v1160 = vrot.slane %v1159, 4
        %v1161 = vadd.f32 %v1159, %v1160
        %v1162 = vrot.slane %v1161, 2
        %v1163 = vadd.f32 %v1161, %v1162
        %v1164 = vrot.slane %v1163, 1
        %v1165 = vadd.f32 %v1163, %v1164
        %v1166 = vsel %vm1144, %v341, 0.0
        %1167 = vadd.xlane.f32.xlu0 %v1166
        %v1168 = vpop.xlane.xlu0 %1167
        %v1169 = vsel %vm1144, %v342, 0.0
        %1170 = vadd.xlane.f32.xlu0 %v1169
        %v1171 = vpop.xlane.xlu0 %1170
        %v1172 = vsel %vm1144, %v343, 0.0
        %1173 = vadd.xlane.f32.xlu0 %v1172
        %v1174 = vpop.xlane.xlu0 %1173
        %v1175 = vsel %vm1144, %v344, 0.0
        %1176 = vadd.xlane.f32.xlu0 %v1175
        %v1177 = vpop.xlane.xlu0 %1176
        %v1178 = vadd.f32 %v1168, %v1171
        %v1179 = vadd.f32 %v1178, %v1174
        %v1180 = vadd.f32 %v1179, %v1177
        %v1181 = vrot.slane %v1180, 4
        %v1182 = vadd.f32 %v1180, %v1181
        %v1183 = vrot.slane %v1182, 2
        %v1184 = vadd.f32 %v1182, %v1183
        %v1185 = vrot.slane %v1184, 1
        %v1186 = vadd.f32 %v1184, %v1185
        %vm1187 = vcmask 7168
        %v1188 = vsel %vm1187, %v1165, %v1186
        %v1189 = vld [vmem:[%s7] sm:$0x1]
        %v1190 = vadd.f32 %v1188, %v1189
        %vm1191 = vcmask 8192
        %1192 = vst.msk [vmem:[%s312] sm:$0x1] %vm1191, %v1190
        %s1193 = sand.u32 %s208, 1
        %s1194 = scalar_lea.sflag [#allocation3], %s1193
        %s1195 = sand.u32 %s208, 1
        %s1196 = scalar_lea.vmem [#allocation2], %s1195
        // Predicated region
        $region60: #{cnn_forward_prepared.1} parent=51 // pred_check
          %p1197 = pneg %p218
        $region61: #{cnn_forward_prepared.1} parent=51 // pred_check_branch
          %1199 = sbr.rel (%p1197) target = $region63
        $region62: #{cnn_forward_prepared.1} parent=51 // pred_region
          %s1201 = ssub.s32 16, 16
          %1202 = vsyncadd %s1194, %s1201
          %s1203 = smul.addr %s22, 16
          %s1204 = scalar_lea.hbm %s8, %s1203
          %s1206 = sshll.u32 %s1196, 4
          %s1207 = int_to_ptr.vmem [resolvable:$true] %s1206
          %1209 = dma.vmem_to_hbm [thread:$0]  %s1207, 16, %s1204, %s1194
        $region63: #{cnn_forward_prepared.1} parent=51 // pred_fallthru
          _
      $region52: #{cnn_forward_prepared.1} parent=5 // pred_fallthru
        _
      %p1210 = scmp.le.s32.totalorder 2, %s17
      // Predicated region
      $region64: #{cnn_forward_prepared.1} parent=5 // pred_check
        %p1211 = pneg %p1210
      $region65: #{cnn_forward_prepared.1} parent=5 // pred_check_branch
        %1213 = sbr.rel (%p1211) target = $region67
      $region66: #{cnn_forward_prepared.1} parent=5 // pred_region
        %s1214 = ssub.s32 %s17, 2
        // Predicated region
        $region68: #{cnn_forward_prepared.1} parent=66 // pred_check
          %p1215 = pneg %p224
        $region69: #{cnn_forward_prepared.1} parent=66 // pred_check_branch
          %1217 = sbr.rel (%p1215) target = $region71
        $region70: #{cnn_forward_prepared.1} parent=66 // pred_region
          %s1218 = sand.u32 %s209, 1
          %s1219 = scalar_lea.sflag [#allocation3], %s1218
          %s1220 = sand.u32 %s209, 1
          %s1221 = scalar_lea.vmem [#allocation2], %s1220
          %1222 = dma.done %s1219, 16
        $region71: #{cnn_forward_prepared.1} parent=66 // pred_fallthru
          _
      $region67: #{cnn_forward_prepared.1} parent=5 // pred_fallthru
        _
    $region6: #{cnn_forward_prepared.1} parent=1 // loop_footer
      %s21 = sadd.s32 1, %s17
    $region7: #{cnn_forward_prepared.1} parent=1 // loop_footer_branch
      %16 = sbr.rel target = $region3
    $region8: #{cnn_forward_prepared.1} parent=1 // loop_exit
      _
    %1223 = vsyncpa [#allocation3], 1
    %s1224 = scalar_lea.sflag [#allocation3], 1
    %1225 = vsyncpa %s1224, 1

</llo_original>
